<compile_context>
chip_gen: v6e
topology: v6e:2x2x1
jax: 0.10.0
libtpu: 0.0.40
codegen_flags: <defaults>
</compile_context>

<pallas_src>
import functools

import jax
import jax.numpy as jnp
from jax import lax
from jax.experimental import pallas as pl
from jax.experimental.pallas import tpu as pltpu

NEG_INF = -1e30
LEAKY_SLOPE = 0.2   # GATv2Conv default negative_slope
BN_EPS = 1e-5       # BatchNorm1d default eps
LANE = 128


def _round_up(v, m):
    return (v + m - 1) // m * m


def _vmem_limit_bytes():
    """Generation-aware scoped-VMEM budget (v5e/v6e: 128 MiB phys, v7x: 64 MiB)."""
    try:
        cap = int(pltpu.get_tpu_info().vmem_capacity_bytes)
    except Exception:
        cap = 64 * 1024 * 1024
    return max(min((cap * 3) // 4, 100 * 1024 * 1024), 32 * 1024 * 1024)


def _choose_tiles(n):
    """Return (target_tile, source_tile, padded_N).

    Source tile must be a multiple of 128 (mask-bias last dim) or the full
    padded N; target tile a multiple of 8.  On low-VMEM chips (v7x) the target
    tile is halved so the streamed [TT,ST,HC] working set still fits.
    """
    n8 = _round_up(max(n, 8), 8)
    if n8 <= LANE:
        return n8, n8, n8
    np_ = _round_up(n, LANE)
    st = LANE
    tt = LANE if _vmem_limit_bytes() >= 80 * 1024 * 1024 else 64
    return tt, st, np_


# --------------------------------------------------------------------------
# Main fused layer kernel: bidirectional GATv2 (online softmax over source
# tiles) + MergeMLP.  Grid = (target tiles ["parallel"], source tiles ["arbitrary"]).
# --------------------------------------------------------------------------
def gat_layer_kernel(x_t_ref, x_s_ref, wl_ref, bl_ref, wr_ref, br_ref,
                     attx_f_ref, attx_b_ref, ef_f_ref, ef_b_ref,
                     mb_f_ref, mb_b_ref,
                     w1f_ref, w1b_ref, b1_ref, w2_ref, b2_ref,
                     y_ref,
                     m_f, d_f, a_f, m_b, d_b, a_b):
    s_idx = pl.program_id(1)
    s_last = pl.num_programs(1) - 1
    hc = attx_f_ref.shape[0]
    tt = x_t_ref.shape[0]
    st = x_s_ref.shape[0]

    @pl.when(s_idx == 0)
    def _():
        for r in (m_f, m_b):
            r[...] = jnp.full(r.shape, NEG_INF, dtype=r.dtype)
        for r in (d_f, a_f, d_b, a_b):
            r[...] = jnp.zeros(r.shape, dtype=r.dtype)

    # per-tile projections: lin_r for the target tile, lin_l for the source
    # tile, both directions packed into one matmul each ([Fp, 2*HC]).
    xt = x_t_ref[...].astype(jnp.bfloat16)
    xs = x_s_ref[...].astype(jnp.bfloat16)
    xr = jnp.dot(xt, wr_ref[...], preferred_element_type=jnp.float32) + br_ref[...]
    xl = jnp.dot(xs, wl_ref[...], preferred_element_type=jnp.float32) + bl_ref[...]

    def direction(xr_d, xl_d, attx_ref, ef_ref, mb_ref, m_s, d_s, a_s):
        # GATv2 pre-activation for all heads, lane-dense at HC lanes.
        s3 = xr_d[:, None, :] + xl_d[None, :, :] + ef_ref[...].astype(jnp.float32)
        g = jnp.where(s3 > 0, s3, LEAKY_SLOPE * s3)             # leaky_relu(0.2)
        # all-head logits in ONE MXU matmul (head h's logit replicated on its
        # C lanes via the block-expanded att matrix).
        logit = jnp.dot(g.reshape(tt * st, hc).astype(jnp.bfloat16), attx_ref[...],
                        preferred_element_type=jnp.float32).reshape(tt, st, hc)
        logit = logit + mb_ref[...][:, :, None]                 # additive edge mask
        # online softmax (flash style) across source tiles
        m_new = jnp.maximum(m_s[...], jnp.max(logit, axis=1))   # [tt, hc]
        corr = jnp.exp(m_s[...] - m_new)
        p = jnp.exp(logit - m_new[:, None, :])                  # [tt, st, hc]
        d_s[...] = corr * d_s[...] + jnp.sum(p, axis=1)
        # normalize-after-aggregation: accumulate un-normalized p @ xl
        a_s[...] = corr * a_s[...] + jnp.sum(p * xl_d[None, :, :], axis=1)
        m_s[...] = m_new

    direction(xr[:, :hc], xl[:, :hc], attx_f_ref, ef_f_ref, mb_f_ref, m_f, d_f, a_f)
    direction(xr[:, hc:], xl[:, hc:], attx_b_ref, ef_b_ref, mb_b_ref, m_b, d_b, a_b)

    @pl.when(s_idx == s_last)
    def _():
        out_f = a_f[...] * pl.reciprocal(d_f[...], approx=True)   # softmax denom (EUP)
        out_b = a_b[...] * pl.reciprocal(d_b[...], approx=True)
        # MergeMLP layer 1: head-mean (1/H), concat and GAT output biases are
        # folded into w1f/w1b/b1 on the host -> two lane-dense matmuls.
        h1 = (jnp.dot(out_f.astype(jnp.bfloat16), w1f_ref[...],
                      preferred_element_type=jnp.float32)
              + jnp.dot(out_b.astype(jnp.bfloat16), w1b_ref[...],
                        preferred_element_type=jnp.float32)
              + b1_ref[...])
        h1 = jnp.maximum(h1, 0.0)
        y_ref[...] = (jnp.dot(h1.astype(jnp.bfloat16), w2_ref[...],
                              preferred_element_type=jnp.float32) + b2_ref[...])


def make_gat_layer_call(np_, fp, hc, cp, tt, st, vmem_bytes):
    t_tiles, s_tiles = np_ // tt, np_ // st
    grid_spec = pltpu.PrefetchScalarGridSpec(
        num_scalar_prefetch=0,
        grid=(t_tiles, s_tiles),
        in_specs=[
            pl.BlockSpec((tt, fp), lambda t, s: (t, 0)),          # x (target tile)
            pl.BlockSpec((st, fp), lambda t, s: (s, 0)),          # x (source tile)
            pl.BlockSpec((fp, 2 * hc), lambda t, s: (0, 0)),      # Wl  [fwd|bwd]
            pl.BlockSpec((1, 2 * hc), lambda t, s: (0, 0)),       # bl
            pl.BlockSpec((fp, 2 * hc), lambda t, s: (0, 0)),      # Wr  [fwd|bwd]
            pl.BlockSpec((1, 2 * hc), lambda t, s: (0, 0)),       # br
            pl.BlockSpec((hc, hc), lambda t, s: (0, 0)),          # attx fwd
            pl.BlockSpec((hc, hc), lambda t, s: (0, 0)),          # attx bwd
            pl.BlockSpec((tt, st, hc), lambda t, s: (t, s, 0)),   # ef fwd (bf16)
            pl.BlockSpec((tt, st, hc), lambda t, s: (t, s, 0)),   # ef bwd (bf16)
            pl.BlockSpec((tt, st), lambda t, s: (t, s)),          # mask bias fwd
            pl.BlockSpec((tt, st), lambda t, s: (t, s)),          # mask bias bwd
            pl.BlockSpec((hc, cp), lambda t, s: (0, 0)),          # w1 (fwd half)
            pl.BlockSpec((hc, cp), lambda t, s: (0, 0)),          # w1 (bwd half)
            pl.BlockSpec((1, cp), lambda t, s: (0, 0)),           # b1 (folded)
            pl.BlockSpec((cp, cp), lambda t, s: (0, 0)),          # w2
            pl.BlockSpec((1, cp), lambda t, s: (0, 0)),           # b2
        ],
        out_specs=pl.BlockSpec((tt, cp), lambda t, s: (t, 0)),
        scratch_shapes=[pltpu.VMEM((tt, hc), jnp.float32)] * 6,   # m/denom/acc x 2 dirs
    )
    return pl.pallas_call(
        gat_layer_kernel,
        out_shape=jax.ShapeDtypeStruct((np_, cp), jnp.float32),
        grid_spec=grid_spec,
        compiler_params=pltpu.CompilerParams(
            dimension_semantics=("parallel", "arbitrary"),
            vmem_limit_bytes=vmem_bytes),
    )


# --------------------------------------------------------------------------
# BatchNorm (training-mode batch stats) + ReLU, split into two tiny kernels
# so the big kernel never needs whole-graph residency.
# --------------------------------------------------------------------------
def bn_stats_kernel(y_ref, gamma_ref, beta_ref, ss_ref, *, n_real, tt):
    t = pl.program_id(0)

    @pl.when(t == 0)
    def _():
        ss_ref[...] = jnp.zeros(ss_ref.shape, dtype=ss_ref.dtype)

    y = y_ref[...]
    rows = t * tt + lax.broadcasted_iota(jnp.int32, y.shape, 0)
    yv = jnp.where(rows < n_real, y, 0.0)                        # exclude pad rows
    ss_ref[0:1, :] += jnp.sum(yv, axis=0, keepdims=True)
    ss_ref[1:2, :] += jnp.sum(yv * yv, axis=0, keepdims=True)

    @pl.when(t == pl.num_programs(0) - 1)
    def _():
        inv_n = 1.0 / float(n_real)
        mean = ss_ref[0:1, :] * inv_n
        var = jnp.maximum(ss_ref[1:2, :] * inv_n - mean * mean, 0.0)  # clamp: no NaN
        scale = gamma_ref[...] * lax.rsqrt(var + BN_EPS)
        ss_ref[0:1, :] = scale
        ss_ref[1:2, :] = beta_ref[...] - mean * scale


def make_bn_stats_call(np_, tt, cp, n_real):
    t_tiles = np_ // tt
    grid_spec = pltpu.PrefetchScalarGridSpec(
        num_scalar_prefetch=0, grid=(t_tiles,),
        in_specs=[pl.BlockSpec((tt, cp), lambda t: (t, 0)),
                  pl.BlockSpec((1, cp), lambda t: (0, 0)),
                  pl.BlockSpec((1, cp), lambda t: (0, 0))],
        out_specs=pl.BlockSpec((2, cp), lambda t: (0, 0)))
    return pl.pallas_call(
        functools.partial(bn_stats_kernel, n_real=n_real, tt=tt),
        out_shape=jax.ShapeDtypeStruct((2, cp), jnp.float32),
        grid_spec=grid_spec,
        compiler_params=pltpu.CompilerParams(dimension_semantics=("arbitrary",)),
    )


def bn_apply_kernel(y_ref, ss_ref, o_ref):
    o_ref[...] = jnp.maximum(y_ref[...] * ss_ref[0:1, :] + ss_ref[1:2, :], 0.0)


def make_bn_apply_call(np_, tt, cp):
    t_tiles = np_ // tt
    grid_spec = pltpu.PrefetchScalarGridSpec(
        num_scalar_prefetch=0, grid=(t_tiles,),
        in_specs=[pl.BlockSpec((tt, cp), lambda t: (t, 0)),
                  pl.BlockSpec((2, cp), lambda t: (0, 0))],
        out_specs=pl.BlockSpec((tt, cp), lambda t: (t, 0)))
    return pl.pallas_call(
        bn_apply_kernel,
        out_shape=jax.ShapeDtypeStruct((np_, cp), jnp.float32),
        grid_spec=grid_spec,
        compiler_params=pltpu.CompilerParams(dimension_semantics=("parallel",)),
    )


# --------------------------------------------------------------------------
# Plain-JAX glue: graph densification + parameter packing / algebraic folding
# --------------------------------------------------------------------------
def mask_bias_dense(edge_index, num_nodes):
    """Additive attention mask (0 for edges incl. self loops, -1e30 otherwise)."""
    src, dst = edge_index[0], edge_index[1]
    mask = jnp.zeros((num_nodes, num_nodes), jnp.float32).at[dst, src].set(1.0)
    idx = jnp.arange(num_nodes)
    mask = mask.at[idx, idx].set(1.0)                 # PyG add_self_loops
    return jnp.where(mask > 0, 0.0, NEG_INF)


def dense_projected_edges(edge_index, edge_attr, num_nodes, we):
    """Project edge attrs per edge ([E,ED]@[ED,HC]) and scatter to a dense bf16
    [N_target, N_source, HC] slab.  Self-loop attr = mean of incoming projected
    attrs (projection of mean == PyG fill_value='mean'); 0 if no in-edges."""
    src, dst = edge_index[0], edge_index[1]
    pe = jnp.dot(edge_attr, we)                        # [E, HC]
    hc = we.shape[1]
    dense = jnp.zeros((num_nodes, num_nodes, hc), jnp.float32).at[dst, src].set(pe)
    deg = jnp.zeros((num_nodes,), jnp.float32).at[dst].add(1.0)
    psum = jnp.zeros((num_nodes, hc), jnp.float32).at[dst].add(pe)
    self_attr = psum / jnp.maximum(deg, 1.0)[:, None]
    idx = jnp.arange(num_nodes)
    dense = dense.at[idx, idx].set(self_attr)
    return dense.astype(jnp.bfloat16)                  # bf16: halves HBM/VMEM traffic


def expand_att(att, heads, c):
    """[H, C] -> [H*C, H*C] block matrix so one MXU matmul gives every head's
    logit replicated across its C lanes (keeps the softmax path lane-dense)."""
    eye = jnp.eye(heads, dtype=att.dtype)
    a = att[:, :, None, None] * eye[:, None, :, None]
    a = jnp.broadcast_to(a, (heads, c, heads, c))
    return a.reshape(heads * c, heads * c)


def prepare_layer(lp, fp, c, heads):
    """Pack / pad / algebraically fold one layer's parameters for the kernel."""
    hc = heads * c
    cp = _round_up(c, LANE)
    f, b, m = lp["fwd"], lp["bwd"], lp["merge"]

    def pad_rows(w):
        return jnp.zeros((fp, hc), jnp.float32).at[:w.shape[0], :].set(w)

    wl = jnp.concatenate([pad_rows(f["wl"]), pad_rows(b["wl"])], axis=1).astype(jnp.bfloat16)
    wr = jnp.concatenate([pad_rows(f["wr"]), pad_rows(b["wr"])], axis=1).astype(jnp.bfloat16)
    bl = jnp.concatenate([f["bl"], b["bl"]], axis=1)
    br = jnp.concatenate([f["br"], b["br"]], axis=1)

    # MergeMLP layer-1 with head-mean (1/H), concat and GAT output biases folded in.
    w1 = m["w1"]                                                   # [2C, C]

    def fold_w1(half):
        w = jnp.tile(half, (heads, 1)) / heads                     # [HC, C]
        return jnp.zeros((hc, cp), jnp.float32).at[:, :c].set(w).astype(jnp.bfloat16)

    w1f, w1b = fold_w1(w1[:c, :]), fold_w1(w1[c:, :])
    b1_raw = m["b1"] + jnp.dot(f["bias"], w1[:c, :]) + jnp.dot(b["bias"], w1[c:, :])
    b1 = jnp.zeros((1, cp), jnp.float32).at[:, :c].set(b1_raw)

    w2 = jnp.zeros((cp, cp), jnp.float32).at[:c, :c].set(m["w2"]).astype(jnp.bfloat16)
    b2 = jnp.zeros((1, cp), jnp.float32).at[:, :c].set(m["b2"])
    gamma = jnp.ones((1, cp), jnp.float32).at[:, :c].set(m["gamma"])
    beta = jnp.zeros((1, cp), jnp.float32).at[:, :c].set(m["beta"])

    return dict(hc=hc, cp=cp, wl=wl, bl=bl, wr=wr, br=br,
                attx_f=expand_att(f["att"], heads, c).astype(jnp.bfloat16),
                attx_b=expand_att(b["att"], heads, c).astype(jnp.bfloat16),
                we_f=f["we"], we_b=b["we"],
                w1f=w1f, w1b=w1b, b1=b1, w2=w2, b2=b2, gamma=gamma, beta=beta)


# --------------------------------------------------------------------------
# Deterministic parameter init (same shapes as the PyTorch module's __init__)
# --------------------------------------------------------------------------
def _glorot(key, shape):
    limit = (6.0 / (shape[0] + shape[1])) ** 0.5
    return jax.random.uniform(key, shape, jnp.float32, -limit, limit)


def init_gat_params(key, fin, c, h, ed):
    ks = jax.random.split(key, 4)
    return dict(
        wl=_glorot(ks[0], (fin, h * c)), bl=jnp.zeros((1, h * c), jnp.float32),
        wr=_glorot(ks[1], (fin, h * c)), br=jnp.zeros((1, h * c), jnp.float32),
        we=_glorot(ks[2], (ed, h * c)),
        att=_glorot(ks[3], (h, c)),
        bias=jnp.zeros((1, c), jnp.float32),
    )


def init_model_params(key, input_size, hidden_sizes, edge_dim, heads):
    layers = []
    dims_in = [input_size] + hidden_sizes[:-1]
    keys = jax.random.split(key, len(hidden_sizes))
    for k, din, c in zip(keys, dims_in, hidden_sizes):
        k1, k2, k3, k4 = jax.random.split(k, 4)
        layers.append(dict(
            fwd=init_gat_params(k1, din, c, heads, edge_dim),
            bwd=init_gat_params(k2, din, c, heads, edge_dim),
            merge=dict(
                w1=_glorot(k3, (2 * c, c)), b1=jnp.zeros((1, c), jnp.float32),
                w2=_glorot(k4, (c, c)), b2=jnp.zeros((1, c), jnp.float32),
                gamma=jnp.ones((1, c), jnp.float32), beta=jnp.zeros((1, c), jnp.float32),
            ),
        ))
    return layers


# --------------------------------------------------------------------------
# Full forward pass (mirrors GATmodel.forward)
# --------------------------------------------------------------------------
def gat_model_forward(x, fwd_edges_index, bwd_edges_index, edge_attr, params, heads):
    n, fin = x.shape
    tt, st, np_ = _choose_tiles(n)
    vmem_bytes = _vmem_limit_bytes()

    fp = _round_up(fin, LANE)
    xp = jnp.zeros((np_, fp), jnp.float32).at[:n, :fin].set(x)  # lane-dense, node-padded
    mb_f = mask_bias_dense(fwd_edges_index, np_)
    mb_b = mask_bias_dense(bwd_edges_index, np_)

    c = None
    for lp in params:
        c = lp["merge"]["w2"].shape[0]
        prep = prepare_layer(lp, fp, c, heads)
        hc, cp = prep["hc"], prep["cp"]
        ef_f = dense_projected_edges(fwd_edges_index, edge_attr, np_, prep["we_f"])
        ef_b = dense_projected_edges(bwd_edges_index, edge_attr, np_, prep["we_b"])

        y = make_gat_layer_call(np_, fp, hc, cp, tt, st, vmem_bytes)(
            xp, xp, prep["wl"], prep["bl"], prep["wr"], prep["br"],
            prep["attx_f"], prep["attx_b"], ef_f, ef_b, mb_f, mb_b,
            prep["w1f"], prep["w1b"], prep["b1"], prep["w2"], prep["b2"])

        ss = make_bn_stats_call(np_, tt, cp, n)(y, prep["gamma"], prep["beta"])
        xp = make_bn_apply_call(np_, tt, cp)(y, ss)
        fp = cp                                                  # next layer's input width
    return xp[:n, :c]                                            # strip padding


# --------------------------------------------------------------------------
if __name__ == "__main__":
    key = jax.random.PRNGKey(0)
    N, INPUT_SIZE, EDGE_DIM, HEADS = 8, 16, 4, 4
    HIDDEN_SIZES = [32, 32]

    # small deterministic graph: 12 directed edges, no self loops, no duplicates
    src = jnp.array([0, 1, 2, 3, 4, 5, 6, 7, 0, 2, 4, 6], jnp.int32)
    dst = jnp.array([1, 2, 3, 4, 5, 6, 7, 0, 3, 5, 7, 1], jnp.int32)
    fwd_edges_index = jnp.stack([src, dst])
    bwd_edges_index = jnp.stack([dst, src])

    kx, ke, kp = jax.random.split(key, 3)
    x = jax.random.normal(kx, (N, INPUT_SIZE), jnp.float32)
    edge_attr = jax.random.normal(ke, (src.shape[0], EDGE_DIM), jnp.float32)
    params = init_model_params(kp, INPUT_SIZE, HIDDEN_SIZES, EDGE_DIM, HEADS)

    fwd_fn = jax.jit(
        lambda xx, fe, be, ea, pp: gat_model_forward(xx, fe, be, ea, pp, HEADS))
    out = jax.block_until_ready(
        fwd_fn(x, fwd_edges_index, bwd_edges_index, edge_attr, params))

    assert out.shape == (N, HIDDEN_SIZES[-1])
    assert bool(jnp.all(jnp.isfinite(out)))
    print("KERNEL_OK")
</pallas_src>

<mosaic_0001>
module attributes {stable_mosaic.version = 11 : i64} {
  func.func @bn_apply_kernel(%arg0: i32, %arg1: memref<8x128xf32, #tpu.memory_space<vmem>>, %arg2: memref<2x128xf32, #tpu.memory_space<vmem>>, %arg3: memref<8x128xf32, #tpu.memory_space<vmem>>) attributes {dimension_semantics = [#tpu.dimension_semantics<parallel>], iteration_bounds = array<i64: 1>, scalar_prefetch = 0 : i64, scratch_operands = 0 : i64, tpu.core_type = #tpu.core_type<tc>, window_params = [{transform_indices = @transform_0, window_bounds = array<i64: 8, 128>}, {pipeline_mode = #tpu.pipeline_mode<synchronous>, transform_indices = @transform_1, window_bounds = array<i64: 2, 128>}, {transform_indices = @transform_2, window_bounds = array<i64: 8, 128>}]} {
    %c0 = arith.constant 0 : index
    %c0_0 = arith.constant 0 : index
    %0 = vector.load %arg1[%c0, %c0_0] : memref<8x128xf32, #tpu.memory_space<vmem>>, vector<8x128xf32>
    %c0_1 = arith.constant 0 : index
    %c0_2 = arith.constant 0 : index
    %1 = vector.load %arg2[%c0_1, %c0_2] : memref<2x128xf32, #tpu.memory_space<vmem>>, vector<1x128xf32>
    %2 = vector.broadcast %1 : vector<1x128xf32> to vector<8x128xf32>
    %3 = arith.mulf %0, %2 : vector<8x128xf32>
    %c1 = arith.constant 1 : index
    %c0_3 = arith.constant 0 : index
    %4 = vector.load %arg2[%c1, %c0_3] : memref<2x128xf32, #tpu.memory_space<vmem>>, vector<1x128xf32>
    %5 = vector.broadcast %4 : vector<1x128xf32> to vector<8x128xf32>
    %6 = arith.addf %3, %5 : vector<8x128xf32>
    %cst = arith.constant 0.000000e+00 : f32
    %7 = vector.broadcast %cst : f32 to vector<8x128xf32>
    %8 = arith.maximumf %6, %7 : vector<8x128xf32>
    %c0_4 = arith.constant 0 : index
    %c0_5 = arith.constant 0 : index
    %9 = vector.load %arg3[%c0_4, %c0_5] : memref<8x128xf32, #tpu.memory_space<vmem>>, vector<8x128xf32>
    tpu.vector_store %arg3[%c0_4, %c0_5], %8 {strides = array<i32>} : memref<8x128xf32, #tpu.memory_space<vmem>>, vector<8x128xf32>,
    return
  }
  func.func @transform_0(%arg0: i32) -> (i32, i32) {
    %c0_i32 = arith.constant 0 : i32
    %c0_i32_0 = arith.constant 0 : i32
    return %arg0, %c0_i32 : i32, i32
  }
  func.func @transform_1(%arg0: i32) -> (i32, i32) {
    %c0_i32 = arith.constant 0 : i32
    %c0_i32_0 = arith.constant 0 : i32
    %c0_i32_1 = arith.constant 0 : i32
    return %c0_i32, %c0_i32_0 : i32, i32
  }
  func.func @transform_2(%arg0: i32) -> (i32, i32) {
    %c0_i32 = arith.constant 0 : i32
    %c0_i32_0 = arith.constant 0 : i32
    return %arg0, %c0_i32 : i32, i32
  }
}

module attributes {stable_mosaic.version = 11 : i64} {
  func.func @bn_stats_kernel(%arg0: i32, %arg1: memref<8x128xf32, #tpu.memory_space<vmem>>, %arg2: memref<1x128xf32, #tpu.memory_space<vmem>>, %arg3: memref<1x128xf32, #tpu.memory_space<vmem>>, %arg4: memref<2x128xf32, #tpu.memory_space<vmem>>) attributes {dimension_semantics = [#tpu.dimension_semantics<arbitrary>], iteration_bounds = array<i64: 1>, scalar_prefetch = 0 : i64, scratch_operands = 0 : i64, tpu.core_type = #tpu.core_type<tc>, window_params = [{transform_indices = @transform_0, window_bounds = array<i64: 8, 128>}, {pipeline_mode = #tpu.pipeline_mode<synchronous>, transform_indices = @transform_1, window_bounds = array<i64: 1, 128>}, {pipeline_mode = #tpu.pipeline_mode<synchronous>, transform_indices = @transform_2, window_bounds = array<i64: 1, 128>}, {pipeline_mode = #tpu.pipeline_mode<synchronous>, transform_indices = @transform_3, window_bounds = array<i64: 2, 128>}]} {
    %c0_i32 = arith.constant 0 : i32
    %0 = arith.cmpi eq, %arg0, %c0_i32 : i32
    %1 = arith.extui %0 : i1 to i32
    %c0_i32_0 = arith.constant 0 : i32
    %2 = arith.cmpi ne, %1, %c0_i32_0 : i32
    scf.if %2 {
      %cst_14 = arith.constant 0.000000e+00 : f32
      %26 = vector.broadcast %cst_14 : f32 to vector<2x128xf32>
      %c0_15 = arith.constant 0 : index
      %c0_16 = arith.constant 0 : index
      %27 = vector.load %arg4[%c0_15, %c0_16] : memref<2x128xf32, #tpu.memory_space<vmem>>, vector<2x128xf32>
      tpu.vector_store %arg4[%c0_15, %c0_16], %26 {strides = array<i32>} : memref<2x128xf32, #tpu.memory_space<vmem>>, vector<2x128xf32>,
    } else {
    }
    %c0 = arith.constant 0 : index
    %c0_1 = arith.constant 0 : index
    %3 = vector.load %arg1[%c0, %c0_1] : memref<8x128xf32, #tpu.memory_space<vmem>>, vector<8x128xf32>
    %c8_i32 = arith.constant 8 : i32
    %4 = arith.muli %arg0, %c8_i32 : i32
    %5 = tpu.iota {dimensions = array<i32: 0>} : vector<8x128xi32>
    %6 = vector.broadcast %4 : i32 to vector<8x128xi32>
    %7 = arith.addi %6, %5 : vector<8x128xi32>
    %c8_i32_2 = arith.constant 8 : i32
    %8 = vector.broadcast %c8_i32_2 : i32 to vector<8x128xi32>
    %9 = arith.cmpi slt, %7, %8 : vector<8x128xi32>
    %cst = arith.constant 0.000000e+00 : f32
    %10 = vector.broadcast %cst : f32 to vector<8x128xf32>
    %11 = arith.select %9, %3, %10 : vector<8x128xi1>, vector<8x128xf32>
    %c0_3 = arith.constant 0 : index
    %c0_4 = arith.constant 0 : index
    %12 = vector.load %arg4[%c0_3, %c0_4] : memref<2x128xf32, #tpu.memory_space<vmem>>, vector<1x128xf32>
    %cst_5 = arith.constant dense<0.000000e+00> : vector<128xf32>
    %13 = vector.multi_reduction <add>, %11, %cst_5 [0] : vector<8x128xf32> to vector<128xf32>
    %14 = vector.shape_cast %13 : vector<128xf32> to vector<1x128xf32>
    %15 = arith.addf %12, %14 : vector<1x128xf32>
    %c0_6 = arith.constant 0 : index
    %c0_7 = arith.constant 0 : index
    %16 = vector.load %arg4[%c0_6, %c0_7] : memref<2x128xf32, #tpu.memory_space<vmem>>, vector<1x128xf32>
    tpu.vector_store %arg4[%c0_6, %c0_7], %15 {strides = array<i32>} : memref<2x128xf32, #tpu.memory_space<vmem>>, vector<1x128xf32>,
    %c1 = arith.constant 1 : index
    %c0_8 = arith.constant 0 : index
    %17 = vector.load %arg4[%c1, %c0_8] : memref<2x128xf32, #tpu.memory_space<vmem>>, vector<1x128xf32>
    %18 = arith.mulf %11, %11 : vector<8x128xf32>
    %cst_9 = arith.constant dense<0.000000e+00> : vector<128xf32>
    %19 = vector.multi_reduction <add>, %18, %cst_9 [0] : vector<8x128xf32> to vector<128xf32>
    %20 = vector.shape_cast %19 : vector<128xf32> to vector<1x128xf32>
    %21 = arith.addf %17, %20 : vector<1x128xf32>
    %c1_10 = arith.constant 1 : index
    %c0_11 = arith.constant 0 : index
    %22 = vector.load %arg4[%c1_10, %c0_11] : memref<2x128xf32, #tpu.memory_space<vmem>>, vector<1x128xf32>
    tpu.vector_store %arg4[%c1_10, %c0_11], %21 {strides = array<i32>} : memref<2x128xf32, #tpu.memory_space<vmem>>, vector<1x128xf32>,
    %c0_i32_12 = arith.constant 0 : i32
    %23 = arith.cmpi eq, %arg0, %c0_i32_12 : i32
    %24 = arith.extui %23 : i1 to i32
    %c0_i32_13 = arith.constant 0 : i32
    %25 = arith.cmpi ne, %24, %c0_i32_13 : i32
    scf.if %25 {
      %c0_14 = arith.constant 0 : index
      %c0_15 = arith.constant 0 : index
      %26 = vector.load %arg4[%c0_14, %c0_15] : memref<2x128xf32, #tpu.memory_space<vmem>>, vector<1x128xf32>
      %cst_16 = arith.constant 1.250000e-01 : f32
      %27 = vector.broadcast %cst_16 : f32 to vector<1x128xf32>
      %28 = arith.mulf %26, %27 : vector<1x128xf32>
      %c1_17 = arith.constant 1 : index
      %c0_18 = arith.constant 0 : index
      %29 = vector.load %arg4[%c1_17, %c0_18] : memref<2x128xf32, #tpu.memory_space<vmem>>, vector<1x128xf32>
      %cst_19 = arith.constant 1.250000e-01 : f32
      %30 = vector.broadcast %cst_19 : f32 to vector<1x128xf32>
      %31 = arith.mulf %29, %30 : vector<1x128xf32>
      %32 = arith.mulf %28, %28 : vector<1x128xf32>
      %33 = arith.subf %31, %32 : vector<1x128xf32>
      %cst_20 = arith.constant 0.000000e+00 : f32
      %34 = vector.broadcast %cst_20 : f32 to vector<1x128xf32>
      %35 = arith.maximumf %33, %34 : vector<1x128xf32>
      %c0_21 = arith.constant 0 : index
      %c0_22 = arith.constant 0 : index
      %36 = vector.load %arg2[%c0_21, %c0_22] : memref<1x128xf32, #tpu.memory_space<vmem>>, vector<1x128xf32>
      %cst_23 = arith.constant 9.99999974E-6 : f32
      %37 = vector.broadcast %cst_23 : f32 to vector<1x128xf32>
      %38 = arith.addf %35, %37 : vector<1x128xf32>
      %39 = math.rsqrt %38 : vector<1x128xf32>
      %40 = arith.mulf %36, %39 : vector<1x128xf32>
      %c0_24 = arith.constant 0 : index
      %c0_25 = arith.constant 0 : index
      %41 = vector.load %arg4[%c0_24, %c0_25] : memref<2x128xf32, #tpu.memory_space<vmem>>, vector<1x128xf32>
      tpu.vector_store %arg4[%c0_24, %c0_25], %40 {strides = array<i32>} : memref<2x128xf32, #tpu.memory_space<vmem>>, vector<1x128xf32>,
      %c0_26 = arith.constant 0 : index
      %c0_27 = arith.constant 0 : index
      %42 = vector.load %arg3[%c0_26, %c0_27] : memref<1x128xf32, #tpu.memory_space<vmem>>, vector<1x128xf32>
      %43 = arith.mulf %28, %40 : vector<1x128xf32>
      %44 = arith.subf %42, %43 : vector<1x128xf32>
      %c1_28 = arith.constant 1 : index
      %c0_29 = arith.constant 0 : index
      %45 = vector.load %arg4[%c1_28, %c0_29] : memref<2x128xf32, #tpu.memory_space<vmem>>, vector<1x128xf32>
      tpu.vector_store %arg4[%c1_28, %c0_29], %44 {strides = array<i32>} : memref<2x128xf32, #tpu.memory_space<vmem>>, vector<1x128xf32>,
    } else {
    }
    return
  }
  func.func @transform_0(%arg0: i32) -> (i32, i32) {
    %c0_i32 = arith.constant 0 : i32
    %c0_i32_0 = arith.constant 0 : i32
    return %arg0, %c0_i32 : i32, i32
  }
  func.func @transform_1(%arg0: i32) -> (i32, i32) {
    %c0_i32 = arith.constant 0 : i32
    %c0_i32_0 = arith.constant 0 : i32
    %c0_i32_1 = arith.constant 0 : i32
    return %c0_i32, %c0_i32_0 : i32, i32
  }
  func.func @transform_2(%arg0: i32) -> (i32, i32) {
    %c0_i32 = arith.constant 0 : i32
    %c0_i32_0 = arith.constant 0 : i32
    %c0_i32_1 = arith.constant 0 : i32
    return %c0_i32, %c0_i32_0 : i32, i32
  }
  func.func @transform_3(%arg0: i32) -> (i32, i32) {
    %c0_i32 = arith.constant 0 : i32
    %c0_i32_0 = arith.constant 0 : i32
    %c0_i32_1 = arith.constant 0 : i32
    return %c0_i32, %c0_i32_0 : i32, i32
  }
}

module attributes {stable_mosaic.version = 11 : i64} {
  func.func @gat_layer_kernel(%arg0: i32, %arg1: i32, %arg2: memref<8x128xf32, #tpu.memory_space<vmem>>, %arg3: memref<8x128xf32, #tpu.memory_space<vmem>>, %arg4: memref<128x256xbf16, #tpu.memory_space<vmem>>, %arg5: memref<1x256xf32, #tpu.memory_space<vmem>>, %arg6: memref<128x256xbf16, #tpu.memory_space<vmem>>, %arg7: memref<1x256xf32, #tpu.memory_space<vmem>>, %arg8: memref<128x128xbf16, #tpu.memory_space<vmem>>, %arg9: memref<128x128xbf16, #tpu.memory_space<vmem>>, %arg10: memref<8x8x128xbf16, #tpu.memory_space<vmem>>, %arg11: memref<8x8x128xbf16, #tpu.memory_space<vmem>>, %arg12: memref<8x8xf32, #tpu.memory_space<vmem>>, %arg13: memref<8x8xf32, #tpu.memory_space<vmem>>, %arg14: memref<128x128xbf16, #tpu.memory_space<vmem>>, %arg15: memref<128x128xbf16, #tpu.memory_space<vmem>>, %arg16: memref<1x128xf32, #tpu.memory_space<vmem>>, %arg17: memref<128x128xbf16, #tpu.memory_space<vmem>>, %arg18: memref<1x128xf32, #tpu.memory_space<vmem>>, %arg19: memref<8x128xf32, #tpu.memory_space<vmem>>, %arg20: memref<8x128xf32, #tpu.memory_space<vmem>>, %arg21: memref<8x128xf32, #tpu.memory_space<vmem>>, %arg22: memref<8x128xf32, #tpu.memory_space<vmem>>, %arg23: memref<8x128xf32, #tpu.memory_space<vmem>>, %arg24: memref<8x128xf32, #tpu.memory_space<vmem>>, %arg25: memref<8x128xf32, #tpu.memory_space<vmem>>) attributes {dimension_semantics = [#tpu.dimension_semantics<parallel>, #tpu.dimension_semantics<arbitrary>], iteration_bounds = array<i64: 1, 1>, scalar_prefetch = 0 : i64, scratch_operands = 6 : i64, tpu.core_type = #tpu.core_type<tc>, window_params = [{transform_indices = @transform_0, window_bounds = array<i64: 8, 128>}, {transform_indices = @transform_1, window_bounds = array<i64: 8, 128>}, {pipeline_mode = #tpu.pipeline_mode<synchronous>, transform_indices = @transform_2, window_bounds = array<i64: 128, 256>}, {pipeline_mode = #tpu.pipeline_mode<synchronous>, transform_indices = @transform_3, window_bounds = array<i64: 1, 256>}, {pipeline_mode = #tpu.pipeline_mode<synchronous>, transform_indices = @transform_4, window_bounds = array<i64: 128, 256>}, {pipeline_mode = #tpu.pipeline_mode<synchronous>, transform_indices = @transform_5, window_bounds = array<i64: 1, 256>}, {pipeline_mode = #tpu.pipeline_mode<synchronous>, transform_indices = @transform_6, window_bounds = array<i64: 128, 128>}, {pipeline_mode = #tpu.pipeline_mode<synchronous>, transform_indices = @transform_7, window_bounds = array<i64: 128, 128>}, {transform_indices = @transform_8, window_bounds = array<i64: 8, 8, 128>}, {transform_indices = @transform_9, window_bounds = array<i64: 8, 8, 128>}, {transform_indices = @transform_10, window_bounds = array<i64: 8, 8>}, {transform_indices = @transform_11, window_bounds = array<i64: 8, 8>}, {pipeline_mode = #tpu.pipeline_mode<synchronous>, transform_indices = @transform_12, window_bounds = array<i64: 128, 128>}, {pipeline_mode = #tpu.pipeline_mode<synchronous>, transform_indices = @transform_13, window_bounds = array<i64: 128, 128>}, {pipeline_mode = #tpu.pipeline_mode<synchronous>, transform_indices = @transform_14, window_bounds = array<i64: 1, 128>}, {pipeline_mode = #tpu.pipeline_mode<synchronous>, transform_indices = @transform_15, window_bounds = array<i64: 128, 128>}, {pipeline_mode = #tpu.pipeline_mode<synchronous>, transform_indices = @transform_16, window_bounds = array<i64: 1, 128>}, {transform_indices = @transform_17, window_bounds = array<i64: 8, 128>}]} {
    %c0_i32 = arith.constant 0 : i32
    %0 = arith.cmpi eq, %arg1, %c0_i32 : i32
    %1 = arith.extui %0 : i1 to i32
    %c0_i32_0 = arith.constant 0 : i32
    %2 = arith.cmpi ne, %1, %c0_i32_0 : i32
    scf.if %2 {
      %cst_69 = arith.constant -1.000000e+30 : f32
      %118 = vector.broadcast %cst_69 : f32 to vector<8x128xf32>
      %c0_70 = arith.constant 0 : index
      %c0_71 = arith.constant 0 : index
      %119 = vector.load %arg20[%c0_70, %c0_71] : memref<8x128xf32, #tpu.memory_space<vmem>>, vector<8x128xf32>
      tpu.vector_store %arg20[%c0_70, %c0_71], %118 {strides = array<i32>} : memref<8x128xf32, #tpu.memory_space<vmem>>, vector<8x128xf32>,
      %cst_72 = arith.constant -1.000000e+30 : f32
      %120 = vector.broadcast %cst_72 : f32 to vector<8x128xf32>
      %c0_73 = arith.constant 0 : index
      %c0_74 = arith.constant 0 : index
      %121 = vector.load %arg23[%c0_73, %c0_74] : memref<8x128xf32, #tpu.memory_space<vmem>>, vector<8x128xf32>
      tpu.vector_store %arg23[%c0_73, %c0_74], %120 {strides = array<i32>} : memref<8x128xf32, #tpu.memory_space<vmem>>, vector<8x128xf32>,
      %cst_75 = arith.constant 0.000000e+00 : f32
      %122 = vector.broadcast %cst_75 : f32 to vector<8x128xf32>
      %c0_76 = arith.constant 0 : index
      %c0_77 = arith.constant 0 : index
      %123 = vector.load %arg21[%c0_76, %c0_77] : memref<8x128xf32, #tpu.memory_space<vmem>>, vector<8x128xf32>
      tpu.vector_store %arg21[%c0_76, %c0_77], %122 {strides = array<i32>} : memref<8x128xf32, #tpu.memory_space<vmem>>, vector<8x128xf32>,
      %cst_78 = arith.constant 0.000000e+00 : f32
      %124 = vector.broadcast %cst_78 : f32 to vector<8x128xf32>
      %c0_79 = arith.constant 0 : index
      %c0_80 = arith.constant 0 : index
      %125 = vector.load %arg22[%c0_79, %c0_80] : memref<8x128xf32, #tpu.memory_space<vmem>>, vector<8x128xf32>
      tpu.vector_store %arg22[%c0_79, %c0_80], %124 {strides = array<i32>} : memref<8x128xf32, #tpu.memory_space<vmem>>, vector<8x128xf32>,
      %cst_81 = arith.constant 0.000000e+00 : f32
      %126 = vector.broadcast %cst_81 : f32 to vector<8x128xf32>
      %c0_82 = arith.constant 0 : index
      %c0_83 = arith.constant 0 : index
      %127 = vector.load %arg24[%c0_82, %c0_83] : memref<8x128xf32, #tpu.memory_space<vmem>>, vector<8x128xf32>
      tpu.vector_store %arg24[%c0_82, %c0_83], %126 {strides = array<i32>} : memref<8x128xf32, #tpu.memory_space<vmem>>, vector<8x128xf32>,
      %cst_84 = arith.constant 0.000000e+00 : f32
      %128 = vector.broadcast %cst_84 : f32 to vector<8x128xf32>
      %c0_85 = arith.constant 0 : index
      %c0_86 = arith.constant 0 : index
      %129 = vector.load %arg25[%c0_85, %c0_86] : memref<8x128xf32, #tpu.memory_space<vmem>>, vector<8x128xf32>
      tpu.vector_store %arg25[%c0_85, %c0_86], %128 {strides = array<i32>} : memref<8x128xf32, #tpu.memory_space<vmem>>, vector<8x128xf32>,
    } else {
    }
    %c0 = arith.constant 0 : index
    %c0_1 = arith.constant 0 : index
    %3 = vector.load %arg2[%c0, %c0_1] : memref<8x128xf32, #tpu.memory_space<vmem>>, vector<8x128xf32>
    %4 = arith.truncf %3 : vector<8x128xf32> to vector<8x128xbf16>
    %c0_2 = arith.constant 0 : index
    %c0_3 = arith.constant 0 : index
    %5 = vector.load %arg3[%c0_2, %c0_3] : memref<8x128xf32, #tpu.memory_space<vmem>>, vector<8x128xf32>
    %6 = arith.truncf %5 : vector<8x128xf32> to vector<8x128xbf16>
    %c0_4 = arith.constant 0 : index
    %c0_5 = arith.constant 0 : index
    %7 = vector.load %arg6[%c0_4, %c0_5] : memref<128x256xbf16, #tpu.memory_space<vmem>>, vector<128x256xbf16>
    %cst = arith.constant dense<0.000000e+00> : vector<8x256xf32>
    %8 = tpu.matmul %4, %7, %cst {dimension_numbers = #tpu.dot_dimension_numbers<[1], [0], [0], [1], [0, 0, 1, 1], [], []>} : vector<8x128xbf16>, vector<128x256xbf16>, vector<8x256xf32> -> vector<8x256xf32>
    %c0_6 = arith.constant 0 : index
    %c0_7 = arith.constant 0 : index
    %9 = vector.load %arg7[%c0_6, %c0_7] : memref<1x256xf32, #tpu.memory_space<vmem>>, vector<1x256xf32>
    %10 = vector.broadcast %9 : vector<1x256xf32> to vector<8x256xf32>
    %11 = arith.addf %8, %10 : vector<8x256xf32>
    %c0_8 = arith.constant 0 : index
    %c0_9 = arith.constant 0 : index
    %12 = vector.load %arg4[%c0_8, %c0_9] : memref<128x256xbf16, #tpu.memory_space<vmem>>, vector<128x256xbf16>
    %cst_10 = arith.constant dense<0.000000e+00> : vector<8x256xf32>
    %13 = tpu.matmul %6, %12, %cst_10 {dimension_numbers = #tpu.dot_dimension_numbers<[1], [0], [0], [1], [0, 0, 1, 1], [], []>} : vector<8x128xbf16>, vector<128x256xbf16>, vector<8x256xf32> -> vector<8x256xf32>
    %c0_11 = arith.constant 0 : index
    %c0_12 = arith.constant 0 : index
    %14 = vector.load %arg5[%c0_11, %c0_12] : memref<1x256xf32, #tpu.memory_space<vmem>>, vector<1x256xf32>
    %15 = vector.broadcast %14 : vector<1x256xf32> to vector<8x256xf32>
    %16 = arith.addf %13, %15 : vector<8x256xf32>
    %17 = vector.extract_strided_slice %11 {offsets = [0, 0], sizes = [8, 128], strides = [1, 1]} : vector<8x256xf32> to vector<8x128xf32>
    %18 = vector.extract_strided_slice %16 {offsets = [0, 0], sizes = [8, 128], strides = [1, 1]} : vector<8x256xf32> to vector<8x128xf32>
    %19 = vector.shape_cast %17 : vector<8x128xf32> to vector<8x1x128xf32>
    %20 = vector.shape_cast %18 : vector<8x128xf32> to vector<1x8x128xf32>
    %21 = vector.broadcast %19 : vector<8x1x128xf32> to vector<8x8x128xf32>
    %22 = vector.broadcast %20 : vector<1x8x128xf32> to vector<8x8x128xf32>
    %23 = arith.addf %21, %22 : vector<8x8x128xf32>
    %c0_13 = arith.constant 0 : index
    %c0_14 = arith.constant 0 : index
    %c0_15 = arith.constant 0 : index
    %24 = vector.load %arg10[%c0_13, %c0_14, %c0_15] : memref<8x8x128xbf16, #tpu.memory_space<vmem>>, vector<8x8x128xbf16>
    %25 = arith.extf %24 : vector<8x8x128xbf16> to vector<8x8x128xf32>
    %26 = arith.addf %23, %25 : vector<8x8x128xf32>
    %cst_16 = arith.constant 0.000000e+00 : f32
    %27 = vector.broadcast %cst_16 : f32 to vector<8x8x128xf32>
    %28 = arith.cmpf ogt, %26, %27 : vector<8x8x128xf32>
    %cst_17 = arith.constant 2.000000e-01 : f32
    %29 = vector.broadcast %cst_17 : f32 to vector<8x8x128xf32>
    %30 = arith.mulf %29, %26 : vector<8x8x128xf32>
    %31 = arith.select %28, %26, %30 : vector<8x8x128xi1>, vector<8x8x128xf32>
    %32 = vector.shape_cast %31 : vector<8x8x128xf32> to vector<64x128xf32>
    %33 = arith.truncf %32 : vector<64x128xf32> to vector<64x128xbf16>
    %c0_18 = arith.constant 0 : index
    %c0_19 = arith.constant 0 : index
    %34 = vector.load %arg8[%c0_18, %c0_19] : memref<128x128xbf16, #tpu.memory_space<vmem>>, vector<128x128xbf16>
    %cst_20 = arith.constant dense<0.000000e+00> : vector<64x128xf32>
    %35 = tpu.matmul %33, %34, %cst_20 {dimension_numbers = #tpu.dot_dimension_numbers<[1], [0], [0], [1], [0, 0, 1, 1], [], []>} : vector<64x128xbf16>, vector<128x128xbf16>, vector<64x128xf32> -> vector<64x128xf32>
    %36 = vector.shape_cast %35 : vector<64x128xf32> to vector<8x8x128xf32>
    %c0_21 = arith.constant 0 : index
    %c0_22 = arith.constant 0 : index
    %37 = vector.load %arg12[%c0_21, %c0_22] : memref<8x8xf32, #tpu.memory_space<vmem>>, vector<8x8xf32>
    %38 = vector.shape_cast %37 : vector<8x8xf32> to vector<8x8xf32>
    %39 = vector.shape_cast %38 : vector<8x8xf32> to vector<8x8x1xf32>
    %40 = vector.broadcast %39 : vector<8x8x1xf32> to vector<8x8x128xf32>
    %41 = arith.addf %36, %40 : vector<8x8x128xf32>
    %c0_23 = arith.constant 0 : index
    %c0_24 = arith.constant 0 : index
    %42 = vector.load %arg20[%c0_23, %c0_24] : memref<8x128xf32, #tpu.memory_space<vmem>>, vector<8x128xf32>
    %cst_25 = arith.constant dense<0xFF800000> : vector<8x128xf32>
    %43 = vector.multi_reduction <maximumf>, %41, %cst_25 [1] : vector<8x8x128xf32> to vector<8x128xf32>
    %44 = arith.maximumf %42, %43 : vector<8x128xf32>
    %c0_26 = arith.constant 0 : index
    %c0_27 = arith.constant 0 : index
    %45 = vector.load %arg20[%c0_26, %c0_27] : memref<8x128xf32, #tpu.memory_space<vmem>>, vector<8x128xf32>
    %46 = arith.subf %45, %44 : vector<8x128xf32>
    %47 = math.exp %46 : vector<8x128xf32>
    %48 = vector.shape_cast %44 : vector<8x128xf32> to vector<8x1x128xf32>
    %49 = vector.broadcast %48 : vector<8x1x128xf32> to vector<8x8x128xf32>
    %50 = arith.subf %41, %49 : vector<8x8x128xf32>
    %51 = math.exp %50 : vector<8x8x128xf32>
    %c0_28 = arith.constant 0 : index
    %c0_29 = arith.constant 0 : index
    %52 = vector.load %arg21[%c0_28, %c0_29] : memref<8x128xf32, #tpu.memory_space<vmem>>, vector<8x128xf32>
    %53 = arith.mulf %47, %52 : vector<8x128xf32>
    %cst_30 = arith.constant dense<0.000000e+00> : vector<8x128xf32>
    %54 = vector.multi_reduction <add>, %51, %cst_30 [1] : vector<8x8x128xf32> to vector<8x128xf32>
    %55 = arith.addf %53, %54 : vector<8x128xf32>
    %c0_31 = arith.constant 0 : index
    %c0_32 = arith.constant 0 : index
    %56 = vector.load %arg21[%c0_31, %c0_32] : memref<8x128xf32, #tpu.memory_space<vmem>>, vector<8x128xf32>
    tpu.vector_store %arg21[%c0_31, %c0_32], %55 {strides = array<i32>} : memref<8x128xf32, #tpu.memory_space<vmem>>, vector<8x128xf32>,
    %c0_33 = arith.constant 0 : index
    %c0_34 = arith.constant 0 : index
    %57 = vector.load %arg22[%c0_33, %c0_34] : memref<8x128xf32, #tpu.memory_space<vmem>>, vector<8x128xf32>
    %58 = arith.mulf %47, %57 : vector<8x128xf32>
    %59 = vector.shape_cast %18 : vector<8x128xf32> to vector<1x8x128xf32>
    %60 = vector.broadcast %59 : vector<1x8x128xf32> to vector<8x8x128xf32>
    %61 = arith.mulf %51, %60 : vector<8x8x128xf32>
    %cst_35 = arith.constant dense<0.000000e+00> : vector<8x128xf32>
    %62 = vector.multi_reduction <add>, %61, %cst_35 [1] : vector<8x8x128xf32> to vector<8x128xf32>
    %63 = arith.addf %58, %62 : vector<8x128xf32>
    %c0_36 = arith.constant 0 : index
    %c0_37 = arith.constant 0 : index
    %64 = vector.load %arg22[%c0_36, %c0_37] : memref<8x128xf32, #tpu.memory_space<vmem>>, vector<8x128xf32>
    tpu.vector_store %arg22[%c0_36, %c0_37], %63 {strides = array<i32>} : memref<8x128xf32, #tpu.memory_space<vmem>>, vector<8x128xf32>,
    %c0_38 = arith.constant 0 : index
    %c0_39 = arith.constant 0 : index
    %65 = vector.load %arg20[%c0_38, %c0_39] : memref<8x128xf32, #tpu.memory_space<vmem>>, vector<8x128xf32>
    tpu.vector_store %arg20[%c0_38, %c0_39], %44 {strides = array<i32>} : memref<8x128xf32, #tpu.memory_space<vmem>>, vector<8x128xf32>,
    %66 = vector.extract_strided_slice %11 {offsets = [0, 128], sizes = [8, 128], strides = [1, 1]} : vector<8x256xf32> to vector<8x128xf32>
    %67 = vector.extract_strided_slice %16 {offsets = [0, 128], sizes = [8, 128], strides = [1, 1]} : vector<8x256xf32> to vector<8x128xf32>
    %68 = vector.shape_cast %66 : vector<8x128xf32> to vector<8x1x128xf32>
    %69 = vector.shape_cast %67 : vector<8x128xf32> to vector<1x8x128xf32>
    %70 = vector.broadcast %68 : vector<8x1x128xf32> to vector<8x8x128xf32>
    %71 = vector.broadcast %69 : vector<1x8x128xf32> to vector<8x8x128xf32>
    %72 = arith.addf %70, %71 : vector<8x8x128xf32>
    %c0_40 = arith.constant 0 : index
    %c0_41 = arith.constant 0 : index
    %c0_42 = arith.constant 0 : index
    %73 = vector.load %arg11[%c0_40, %c0_41, %c0_42] : memref<8x8x128xbf16, #tpu.memory_space<vmem>>, vector<8x8x128xbf16>
    %74 = arith.extf %73 : vector<8x8x128xbf16> to vector<8x8x128xf32>
    %75 = arith.addf %72, %74 : vector<8x8x128xf32>
    %cst_43 = arith.constant 0.000000e+00 : f32
    %76 = vector.broadcast %cst_43 : f32 to vector<8x8x128xf32>
    %77 = arith.cmpf ogt, %75, %76 : vector<8x8x128xf32>
    %cst_44 = arith.constant 2.000000e-01 : f32
    %78 = vector.broadcast %cst_44 : f32 to vector<8x8x128xf32>
    %79 = arith.mulf %78, %75 : vector<8x8x128xf32>
    %80 = arith.select %77, %75, %79 : vector<8x8x128xi1>, vector<8x8x128xf32>
    %81 = vector.shape_cast %80 : vector<8x8x128xf32> to vector<64x128xf32>
    %82 = arith.truncf %81 : vector<64x128xf32> to vector<64x128xbf16>
    %c0_45 = arith.constant 0 : index
    %c0_46 = arith.constant 0 : index
    %83 = vector.load %arg9[%c0_45, %c0_46] : memref<128x128xbf16, #tpu.memory_space<vmem>>, vector<128x128xbf16>
    %cst_47 = arith.constant dense<0.000000e+00> : vector<64x128xf32>
    %84 = tpu.matmul %82, %83, %cst_47 {dimension_numbers = #tpu.dot_dimension_numbers<[1], [0], [0], [1], [0, 0, 1, 1], [], []>} : vector<64x128xbf16>, vector<128x128xbf16>, vector<64x128xf32> -> vector<64x128xf32>
    %85 = vector.shape_cast %84 : vector<64x128xf32> to vector<8x8x128xf32>
    %c0_48 = arith.constant 0 : index
    %c0_49 = arith.constant 0 : index
    %86 = vector.load %arg13[%c0_48, %c0_49] : memref<8x8xf32, #tpu.memory_space<vmem>>, vector<8x8xf32>
    %87 = vector.shape_cast %86 : vector<8x8xf32> to vector<8x8xf32>
    %88 = vector.shape_cast %87 : vector<8x8xf32> to vector<8x8x1xf32>
    %89 = vector.broadcast %88 : vector<8x8x1xf32> to vector<8x8x128xf32>
    %90 = arith.addf %85, %89 : vector<8x8x128xf32>
    %c0_50 = arith.constant 0 : index
    %c0_51 = arith.constant 0 : index
    %91 = vector.load %arg23[%c0_50, %c0_51] : memref<8x128xf32, #tpu.memory_space<vmem>>, vector<8x128xf32>
    %cst_52 = arith.constant dense<0xFF800000> : vector<8x128xf32>
    %92 = vector.multi_reduction <maximumf>, %90, %cst_52 [1] : vector<8x8x128xf32> to vector<8x128xf32>
    %93 = arith.maximumf %91, %92 : vector<8x128xf32>
    %c0_53 = arith.constant 0 : index
    %c0_54 = arith.constant 0 : index
    %94 = vector.load %arg23[%c0_53, %c0_54] : memref<8x128xf32, #tpu.memory_space<vmem>>, vector<8x128xf32>
    %95 = arith.subf %94, %93 : vector<8x128xf32>
    %96 = math.exp %95 : vector<8x128xf32>
    %97 = vector.shape_cast %93 : vector<8x128xf32> to vector<8x1x128xf32>
    %98 = vector.broadcast %97 : vector<8x1x128xf32> to vector<8x8x128xf32>
    %99 = arith.subf %90, %98 : vector<8x8x128xf32>
    %100 = math.exp %99 : vector<8x8x128xf32>
    %c0_55 = arith.constant 0 : index
    %c0_56 = arith.constant 0 : index
    %101 = vector.load %arg24[%c0_55, %c0_56] : memref<8x128xf32, #tpu.memory_space<vmem>>, vector<8x128xf32>
    %102 = arith.mulf %96, %101 : vector<8x128xf32>
    %cst_57 = arith.constant dense<0.000000e+00> : vector<8x128xf32>
    %103 = vector.multi_reduction <add>, %100, %cst_57 [1] : vector<8x8x128xf32> to vector<8x128xf32>
    %104 = arith.addf %102, %103 : vector<8x128xf32>
    %c0_58 = arith.constant 0 : index
    %c0_59 = arith.constant 0 : index
    %105 = vector.load %arg24[%c0_58, %c0_59] : memref<8x128xf32, #tpu.memory_space<vmem>>, vector<8x128xf32>
    tpu.vector_store %arg24[%c0_58, %c0_59], %104 {strides = array<i32>} : memref<8x128xf32, #tpu.memory_space<vmem>>, vector<8x128xf32>,
    %c0_60 = arith.constant 0 : index
    %c0_61 = arith.constant 0 : index
    %106 = vector.load %arg25[%c0_60, %c0_61] : memref<8x128xf32, #tpu.memory_space<vmem>>, vector<8x128xf32>
    %107 = arith.mulf %96, %106 : vector<8x128xf32>
    %108 = vector.shape_cast %67 : vector<8x128xf32> to vector<1x8x128xf32>
    %109 = vector.broadcast %108 : vector<1x8x128xf32> to vector<8x8x128xf32>
    %110 = arith.mulf %100, %109 : vector<8x8x128xf32>
    %cst_62 = arith.constant dense<0.000000e+00> : vector<8x128xf32>
    %111 = vector.multi_reduction <add>, %110, %cst_62 [1] : vector<8x8x128xf32> to vector<8x128xf32>
    %112 = arith.addf %107, %111 : vector<8x128xf32>
    %c0_63 = arith.constant 0 : index
    %c0_64 = arith.constant 0 : index
    %113 = vector.load %arg25[%c0_63, %c0_64] : memref<8x128xf32, #tpu.memory_space<vmem>>, vector<8x128xf32>
    tpu.vector_store %arg25[%c0_63, %c0_64], %112 {strides = array<i32>} : memref<8x128xf32, #tpu.memory_space<vmem>>, vector<8x128xf32>,
    %c0_65 = arith.constant 0 : index
    %c0_66 = arith.constant 0 : index
    %114 = vector.load %arg23[%c0_65, %c0_66] : memref<8x128xf32, #tpu.memory_space<vmem>>, vector<8x128xf32>
    tpu.vector_store %arg23[%c0_65, %c0_66], %93 {strides = array<i32>} : memref<8x128xf32, #tpu.memory_space<vmem>>, vector<8x128xf32>,
    %c0_i32_67 = arith.constant 0 : i32
    %115 = arith.cmpi eq, %arg1, %c0_i32_67 : i32
    %116 = arith.extui %115 : i1 to i32
    %c0_i32_68 = arith.constant 0 : i32
    %117 = arith.cmpi ne, %116, %c0_i32_68 : i32
    scf.if %117 {
      %c0_69 = arith.constant 0 : index
      %c0_70 = arith.constant 0 : index
      %118 = vector.load %arg22[%c0_69, %c0_70] : memref<8x128xf32, #tpu.memory_space<vmem>>, vector<8x128xf32>
      %c0_71 = arith.constant 0 : index
      %c0_72 = arith.constant 0 : index
      %119 = vector.load %arg21[%c0_71, %c0_72] : memref<8x128xf32, #tpu.memory_space<vmem>>, vector<8x128xf32>
      %120 = tpu.reciprocal %119 {approx = true} : vector<8x128xf32> -> vector<8x128xf32>
      %121 = arith.mulf %118, %120 : vector<8x128xf32>
      %c0_73 = arith.constant 0 : index
      %c0_74 = arith.constant 0 : index
      %122 = vector.load %arg25[%c0_73, %c0_74] : memref<8x128xf32, #tpu.memory_space<vmem>>, vector<8x128xf32>
      %c0_75 = arith.constant 0 : index
      %c0_76 = arith.constant 0 : index
      %123 = vector.load %arg24[%c0_75, %c0_76] : memref<8x128xf32, #tpu.memory_space<vmem>>, vector<8x128xf32>
      %124 = tpu.reciprocal %123 {approx = true} : vector<8x128xf32> -> vector<8x128xf32>
      %125 = arith.mulf %122, %124 : vector<8x128xf32>
      %126 = arith.truncf %121 : vector<8x128xf32> to vector<8x128xbf16>
      %c0_77 = arith.constant 0 : index
      %c0_78 = arith.constant 0 : index
      %127 = vector.load %arg14[%c0_77, %c0_78] : memref<128x128xbf16, #tpu.memory_space<vmem>>, vector<128x128xbf16>
      %cst_79 = arith.constant dense<0.000000e+00> : vector<8x128xf32>
      %128 = tpu.matmul %126, %127, %cst_79 {dimension_numbers = #tpu.dot_dimension_numbers<[1], [0], [0], [1], [0, 0, 1, 1], [], []>} : vector<8x128xbf16>, vector<128x128xbf16>, vector<8x128xf32> -> vector<8x128xf32>
      %129 = arith.truncf %125 : vector<8x128xf32> to vector<8x128xbf16>
      %c0_80 = arith.constant 0 : index
      %c0_81 = arith.constant 0 : index
      %130 = vector.load %arg15[%c0_80, %c0_81] : memref<128x128xbf16, #tpu.memory_space<vmem>>, vector<128x128xbf16>
      %cst_82 = arith.constant dense<0.000000e+00> : vector<8x128xf32>
      %131 = tpu.matmul %129, %130, %cst_82 {dimension_numbers = #tpu.dot_dimension_numbers<[1], [0], [0], [1], [0, 0, 1, 1], [], []>} : vector<8x128xbf16>, vector<128x128xbf16>, vector<8x128xf32> -> vector<8x128xf32>
      %132 = arith.addf %128, %131 : vector<8x128xf32>
      %c0_83 = arith.constant 0 : index
      %c0_84 = arith.constant 0 : index
      %133 = vector.load %arg16[%c0_83, %c0_84] : memref<1x128xf32, #tpu.memory_space<vmem>>, vector<1x128xf32>
      %134 = vector.broadcast %133 : vector<1x128xf32> to vector<8x128xf32>
      %135 = arith.addf %132, %134 : vector<8x128xf32>
      %cst_85 = arith.constant 0.000000e+00 : f32
      %136 = vector.broadcast %cst_85 : f32 to vector<8x128xf32>
      %137 = arith.maximumf %135, %136 : vector<8x128xf32>
      %138 = arith.truncf %137 : vector<8x128xf32> to vector<8x128xbf16>
      %c0_86 = arith.constant 0 : index
      %c0_87 = arith.constant 0 : index
      %139 = vector.load %arg17[%c0_86, %c0_87] : memref<128x128xbf16, #tpu.memory_space<vmem>>, vector<128x128xbf16>
      %cst_88 = arith.constant dense<0.000000e+00> : vector<8x128xf32>
      %140 = tpu.matmul %138, %139, %cst_88 {dimension_numbers = #tpu.dot_dimension_numbers<[1], [0], [0], [1], [0, 0, 1, 1], [], []>} : vector<8x128xbf16>, vector<128x128xbf16>, vector<8x128xf32> -> vector<8x128xf32>
      %c0_89 = arith.constant 0 : index
      %c0_90 = arith.constant 0 : index
      %141 = vector.load %arg18[%c0_89, %c0_90] : memref<1x128xf32, #tpu.memory_space<vmem>>, vector<1x128xf32>
      %142 = vector.broadcast %141 : vector<1x128xf32> to vector<8x128xf32>
      %143 = arith.addf %140, %142 : vector<8x128xf32>
      %c0_91 = arith.constant 0 : index
      %c0_92 = arith.constant 0 : index
      %144 = vector.load %arg19[%c0_91, %c0_92] : memref<8x128xf32, #tpu.memory_space<vmem>>, vector<8x128xf32>
      tpu.vector_store %arg19[%c0_91, %c0_92], %143 {strides = array<i32>} : memref<8x128xf32, #tpu.memory_space<vmem>>, vector<8x128xf32>,
    } else {
    }
    return
  }
  func.func @transform_0(%arg0: i32, %arg1: i32) -> (i32, i32) {
    %c0_i32 = arith.constant 0 : i32
    %c0_i32_0 = arith.constant 0 : i32
    return %arg0, %c0_i32 : i32, i32
  }
  func.func @transform_1(%arg0: i32, %arg1: i32) -> (i32, i32) {
    %c0_i32 = arith.constant 0 : i32
    %c0_i32_0 = arith.constant 0 : i32
    return %arg1, %c0_i32 : i32, i32
  }
  func.func @transform_2(%arg0: i32, %arg1: i32) -> (i32, i32) {
    %c0_i32 = arith.constant 0 : i32
    %c0_i32_0 = arith.constant 0 : i32
    %c0_i32_1 = arith.constant 0 : i32
    return %c0_i32, %c0_i32_0 : i32, i32
  }
  func.func @transform_3(%arg0: i32, %arg1: i32) -> (i32, i32) {
    %c0_i32 = arith.constant 0 : i32
    %c0_i32_0 = arith.constant 0 : i32
    %c0_i32_1 = arith.constant 0 : i32
    return %c0_i32, %c0_i32_0 : i32, i32
  }
  func.func @transform_4(%arg0: i32, %arg1: i32) -> (i32, i32) {
    %c0_i32 = arith.constant 0 : i32
    %c0_i32_0 = arith.constant 0 : i32
    %c0_i32_1 = arith.constant 0 : i32
    return %c0_i32, %c0_i32_0 : i32, i32
  }
  func.func @transform_5(%arg0: i32, %arg1: i32) -> (i32, i32) {
    %c0_i32 = arith.constant 0 : i32
    %c0_i32_0 = arith.constant 0 : i32
    %c0_i32_1 = arith.constant 0 : i32
    return %c0_i32, %c0_i32_0 : i32, i32
  }
  func.func @transform_6(%arg0: i32, %arg1: i32) -> (i32, i32) {
    %c0_i32 = arith.constant 0 : i32
    %c0_i32_0 = arith.constant 0 : i32
    %c0_i32_1 = arith.constant 0 : i32
    return %c0_i32, %c0_i32_0 : i32, i32
  }
  func.func @transform_7(%arg0: i32, %arg1: i32) -> (i32, i32) {
    %c0_i32 = arith.constant 0 : i32
    %c0_i32_0 = arith.constant 0 : i32
    %c0_i32_1 = arith.constant 0 : i32
    return %c0_i32, %c0_i32_0 : i32, i32
  }
  func.func @transform_8(%arg0: i32, %arg1: i32) -> (i32, i32, i32) {
    %c0_i32 = arith.constant 0 : i32
    %c0_i32_0 = arith.constant 0 : i32
    return %arg0, %arg1, %c0_i32 : i32, i32, i32
  }
  func.func @transform_9(%arg0: i32, %arg1: i32) -> (i32, i32, i32) {
    %c0_i32 = arith.constant 0 : i32
    %c0_i32_0 = arith.constant 0 : i32
    return %arg0, %arg1, %c0_i32 : i32, i32, i32
  }
  func.func @transform_10(%arg0: i32, %arg1: i32) -> (i32, i32) {
    %c0_i32 = arith.constant 0 : i32
    return %arg0, %arg1 : i32, i32
  }
  func.func @transform_11(%arg0: i32, %arg1: i32) -> (i32, i32) {
    %c0_i32 = arith.constant 0 : i32
    return %arg0, %arg1 : i32, i32
  }
  func.func @transform_12(%arg0: i32, %arg1: i32) -> (i32, i32) {
    %c0_i32 = arith.constant 0 : i32
    %c0_i32_0 = arith.constant 0 : i32
    %c0_i32_1 = arith.constant 0 : i32
    return %c0_i32, %c0_i32_0 : i32, i32
  }
  func.func @transform_13(%arg0: i32, %arg1: i32) -> (i32, i32) {
    %c0_i32 = arith.constant 0 : i32
    %c0_i32_0 = arith.constant 0 : i32
    %c0_i32_1 = arith.constant 0 : i32
    return %c0_i32, %c0_i32_0 : i32, i32
  }
  func.func @transform_14(%arg0: i32, %arg1: i32) -> (i32, i32) {
    %c0_i32 = arith.constant 0 : i32
    %c0_i32_0 = arith.constant 0 : i32
    %c0_i32_1 = arith.constant 0 : i32
    return %c0_i32, %c0_i32_0 : i32, i32
  }
  func.func @transform_15(%arg0: i32, %arg1: i32) -> (i32, i32) {
    %c0_i32 = arith.constant 0 : i32
    %c0_i32_0 = arith.constant 0 : i32
    %c0_i32_1 = arith.constant 0 : i32
    return %c0_i32, %c0_i32_0 : i32, i32
  }
  func.func @transform_16(%arg0: i32, %arg1: i32) -> (i32, i32) {
    %c0_i32 = arith.constant 0 : i32
    %c0_i32_0 = arith.constant 0 : i32
    %c0_i32_1 = arith.constant 0 : i32
    return %c0_i32, %c0_i32_0 : i32, i32
  }
  func.func @transform_17(%arg0: i32, %arg1: i32) -> (i32, i32) {
    %c0_i32 = arith.constant 0 : i32
    %c0_i32_0 = arith.constant 0 : i32
    return %arg0, %c0_i32 : i32, i32
  }
}

module attributes {stable_mosaic.version = 11 : i64} {
  func.func @bn_apply_kernel(%arg0: i32, %arg1: memref<8x128xf32, #tpu.memory_space<vmem>>, %arg2: memref<2x128xf32, #tpu.memory_space<vmem>>, %arg3: memref<8x128xf32, #tpu.memory_space<vmem>>) attributes {dimension_semantics = [#tpu.dimension_semantics<parallel>], iteration_bounds = array<i64: 1>, scalar_prefetch = 0 : i64, scratch_operands = 0 : i64, tpu.core_type = #tpu.core_type<tc>, window_params = [{transform_indices = @transform_0, window_bounds = array<i64: 8, 128>}, {pipeline_mode = #tpu.pipeline_mode<synchronous>, transform_indices = @transform_1, window_bounds = array<i64: 2, 128>}, {transform_indices = @transform_2, window_bounds = array<i64: 8, 128>}]} {
    %c0 = arith.constant 0 : index
    %c0_0 = arith.constant 0 : index
    %0 = vector.load %arg1[%c0, %c0_0] : memref<8x128xf32, #tpu.memory_space<vmem>>, vector<8x128xf32>
    %c0_1 = arith.constant 0 : index
    %c0_2 = arith.constant 0 : index
    %1 = vector.load %arg2[%c0_1, %c0_2] : memref<2x128xf32, #tpu.memory_space<vmem>>, vector<1x128xf32>
    %2 = vector.broadcast %1 : vector<1x128xf32> to vector<8x128xf32>
    %3 = arith.mulf %0, %2 : vector<8x128xf32>
    %c1 = arith.constant 1 : index
    %c0_3 = arith.constant 0 : index
    %4 = vector.load %arg2[%c1, %c0_3] : memref<2x128xf32, #tpu.memory_space<vmem>>, vector<1x128xf32>
    %5 = vector.broadcast %4 : vector<1x128xf32> to vector<8x128xf32>
    %6 = arith.addf %3, %5 : vector<8x128xf32>
    %cst = arith.constant 0.000000e+00 : f32
    %7 = vector.broadcast %cst : f32 to vector<8x128xf32>
    %8 = arith.maximumf %6, %7 : vector<8x128xf32>
    %c0_4 = arith.constant 0 : index
    %c0_5 = arith.constant 0 : index
    %9 = vector.load %arg3[%c0_4, %c0_5] : memref<8x128xf32, #tpu.memory_space<vmem>>, vector<8x128xf32>
    tpu.vector_store %arg3[%c0_4, %c0_5], %8 {strides = array<i32>} : memref<8x128xf32, #tpu.memory_space<vmem>>, vector<8x128xf32>,
    return
  }
  func.func @transform_0(%arg0: i32) -> (i32, i32) {
    %c0_i32 = arith.constant 0 : i32
    %c0_i32_0 = arith.constant 0 : i32
    return %arg0, %c0_i32 : i32, i32
  }
  func.func @transform_1(%arg0: i32) -> (i32, i32) {
    %c0_i32 = arith.constant 0 : i32
    %c0_i32_0 = arith.constant 0 : i32
    %c0_i32_1 = arith.constant 0 : i32
    return %c0_i32, %c0_i32_0 : i32, i32
  }
  func.func @transform_2(%arg0: i32) -> (i32, i32) {
    %c0_i32 = arith.constant 0 : i32
    %c0_i32_0 = arith.constant 0 : i32
    return %arg0, %c0_i32 : i32, i32
  }
}

</mosaic_0001>

<llo_original>
// kernel: _lambda_.7
$region0: #{_lambda_.7}
  #allocation0 [shape = 'u32[]', space=smem, size = 0x4, offset = 0x4, fixed_abs, tag = 'smem constant byte address 0x4 - core index']
  #allocation1 [shape = 'u32[144,128]{1,0:T(1,128)}', space=vmem, size = 0x12000, scoped, tag = 'internal scratch']
  %s0 = inlined_call_operand.vmem [shape: f32[8,128], index: 0, kind: input, shape index: {}]
  %s1 = inlined_call_operand.vmem [shape: f32[1,128], index: 1, kind: input, shape index: {}]
  %s2 = inlined_call_operand.vmem [shape: f32[1,128], index: 2, kind: input, shape index: {}]
  %s3 = inlined_call_operand.vmem [shape: f32[2,128], index: 3, kind: output, shape index: {}]
  %s4 = sld [smem:[#allocation0]]
  $region30: #{_lambda_.7} parent=0
    _
  %s6 = ssub.s32 1, %s4
  %s7 = scalar_select 0, %s6, %s4
  // Predicated region
  $region2: #{_lambda_.7} parent=0 // pred_check
    _
  $region3: #{_lambda_.7} parent=0 // pred_check_branch
    %9 = sbr.rel (0) target = $region5
  $region4: #{_lambda_.7} parent=0 // pred_region
    _
  $region5: #{_lambda_.7} parent=0 // pred_fallthru
    _
  // Predicated region
  $region6: #{_lambda_.7} parent=0 // pred_check
    _
  $region7: #{_lambda_.7} parent=0 // pred_check_branch
    %11 = sbr.rel (0) target = $region9
  $region8: #{_lambda_.7} parent=0 // pred_region
    _
  $region9: #{_lambda_.7} parent=0 // pred_fallthru
    _
  // Predicated region
  $region10: #{_lambda_.7} parent=0 // pred_check
    _
  $region11: #{_lambda_.7} parent=0 // pred_check_branch
    %13 = sbr.rel (0) target = $region13
  $region12: #{_lambda_.7} parent=0 // pred_region
    _
  $region13: #{_lambda_.7} parent=0 // pred_fallthru
    _
  %p14 = scmp.eq.s32.totalorder 0, 0
  // Predicated region
  $region14: #{_lambda_.7} parent=0 // pred_check
    %p15 = pneg %p14
  $region15: #{_lambda_.7} parent=0 // pred_check_branch
    %17 = sbr.rel (%p15) target = $region17
  $region16: #{_lambda_.7} parent=0 // pred_region
    %18 = vst [vmem:[%s3] sm:$0x3] 0.0
  $region17: #{_lambda_.7} parent=0 // pred_fallthru
    _
  %v19 = vld [vmem:[%s0] sm:$0xff]
  %s20 = smul.u32 0, 8
  %v21 = vlaneseq
  %v22 = vshrl.u32 %v21, 7
  %v23 = vstv %s20
  %v24 = vadd.s32 %v23, %v22
  %vm25 = vcmp.lt.s32.totalorder %v24, 8
  %v26 = vsel %vm25, %v19, 0.0
  %v27 = vld [vmem:[%s3] sm:$0x1]
  %v28 = vrot.slane %v26, 4
  %v29 = vadd.f32 %v26, %v28
  %v30 = vrot.slane %v29, 2
  %v31 = vadd.f32 %v29, %v30
  %v32 = vrot.slane %v31, 1
  %v33 = vadd.f32 %v31, %v32
  %v34 = vadd.f32 %v27, %v33
  %35 = vst [vmem:[%s3] sm:$0x1] %v34
  %v36 = vld [vmem:[%s3 + $0x1] sm:$0x1]
  %v37 = vmul.f32 %v26, %v26
  %v38 = vrot.slane %v37, 4
  %v39 = vadd.f32 %v37, %v38
  %v40 = vrot.slane %v39, 2
  %v41 = vadd.f32 %v39, %v40
  %v42 = vrot.slane %v41, 1
  %v43 = vadd.f32 %v41, %v42
  %v44 = vadd.f32 %v36, %v43
  %45 = vst [vmem:[%s3 + $0x1] sm:$0x1] %v44
  // Predicated region
  $region18: #{_lambda_.7} parent=0 // pred_check
    %p46 = pneg %p14
  $region19: #{_lambda_.7} parent=0 // pred_check_branch
    %48 = sbr.rel (%p46) target = $region21
  $region20: #{_lambda_.7} parent=0 // pred_region
    %v49 = vld [vmem:[%s3] sm:$0x1]
    %v50 = vmul.f32 %v49, 0.125
    %v51 = vld [vmem:[%s3 + $0x1] sm:$0x1]
    %v52 = vmul.f32 %v51, 0.125
    %v53 = vmul.f32 %v50, %v50
    %v54 = vsub.f32 %v52, %v53
    %v55 = vmax.f32 %v54, 0.0
    %v56 = vld [vmem:[%s1] sm:$0x1]
    %v57 = vadd.f32 %v55, 1e-05
    %v58 = vrsqrt.pop %v57
    %v59 = vmul.f32 %v56, %v58
    %60 = vst [vmem:[%s3] sm:$0x1] %v59
    %v61 = vld [vmem:[%s2] sm:$0x1]
    %v62 = vmul.f32 %v50, %v59
    %v63 = vsub.f32 %v61, %v62
    %64 = vst [vmem:[%s3 + $0x1] sm:$0x1] %v63
  $region21: #{_lambda_.7} parent=0 // pred_fallthru
    _
  // Predicated region
  $region22: #{_lambda_.7} parent=0 // pred_check
    _
  $region23: #{_lambda_.7} parent=0 // pred_check_branch
    %66 = sbr.rel (0) target = $region25
  $region24: #{_lambda_.7} parent=0 // pred_region
    _
  $region25: #{_lambda_.7} parent=0 // pred_fallthru
    _
  // Predicated region
  $region26: #{_lambda_.7} parent=0 // pred_check
    _
  $region27: #{_lambda_.7} parent=0 // pred_check_branch
    %68 = sbr.rel (0) target = $region29
  $region28: #{_lambda_.7} parent=0 // pred_region
    _
  $region29: #{_lambda_.7} parent=0 // pred_fallthru
    _

// kernel: _lambda_.8
$region0: #{_lambda_.8}
  #allocation0 [shape = 'u32[]', space=smem, size = 0x4, offset = 0x4, fixed_abs, tag = 'smem constant byte address 0x4 - core index']
  #allocation1 [shape = 'u32[144,128]{1,0:T(1,128)}', space=vmem, size = 0x12000, scoped, tag = 'internal scratch']
  %s0 = inlined_call_operand.vmem [shape: f32[8,128], index: 0, kind: input, shape index: {}]
  %s1 = inlined_call_operand.vmem [shape: f32[2,128], index: 1, kind: input, shape index: {}]
  %s2 = inlined_call_operand.vmem [shape: f32[8,128], index: 2, kind: output, shape index: {}]
  %s3 = sld [smem:[#allocation0]]
  $region18: #{_lambda_.8} parent=0
    _
  %s5 = ssub.s32 1, %s3
  %s6 = scalar_select 0, %s5, %s3
  // Predicated region
  $region2: #{_lambda_.8} parent=0 // pred_check
    _
  $region3: #{_lambda_.8} parent=0 // pred_check_branch
    %8 = sbr.rel (0) target = $region5
  $region4: #{_lambda_.8} parent=0 // pred_region
    _
  $region5: #{_lambda_.8} parent=0 // pred_fallthru
    _
  // Predicated region
  $region6: #{_lambda_.8} parent=0 // pred_check
    _
  $region7: #{_lambda_.8} parent=0 // pred_check_branch
    %10 = sbr.rel (0) target = $region9
  $region8: #{_lambda_.8} parent=0 // pred_region
    _
  $region9: #{_lambda_.8} parent=0 // pred_fallthru
    _
  %v11 = vld [vmem:[%s0] sm:$0xff]
  %v12 = vld [vmem:[%s1] sm:$0x1]
  %v13 = vlaneseq
  %v14 = vshrl.u32 %v13, 7
  %v15 = vsub.s32 0, %v14
  %v16 = vrot.slane %v12, %v15
  %v17 = vmul.f32 %v11, %v16
  %v18 = vld [vmem:[%s1 + $0x1] sm:$0x1]
  %v19 = vlaneseq
  %v20 = vshrl.u32 %v19, 7
  %v21 = vsub.s32 0, %v20
  %v22 = vrot.slane %v18, %v21
  %v23 = vadd.f32 %v17, %v22
  %v24 = vmax.f32 %v23, 0.0
  %25 = vst [vmem:[%s2] sm:$0xff] %v24
  // Predicated region
  $region10: #{_lambda_.8} parent=0 // pred_check
    _
  $region11: #{_lambda_.8} parent=0 // pred_check_branch
    %27 = sbr.rel (0) target = $region13
  $region12: #{_lambda_.8} parent=0 // pred_region
    _
  $region13: #{_lambda_.8} parent=0 // pred_fallthru
    _
  // Predicated region
  $region14: #{_lambda_.8} parent=0 // pred_check
    _
  $region15: #{_lambda_.8} parent=0 // pred_check_branch
    %29 = sbr.rel (0) target = $region17
  $region16: #{_lambda_.8} parent=0 // pred_region
    _
  $region17: #{_lambda_.8} parent=0 // pred_fallthru
    _

// kernel: _lambda_.11
$region0: #{_lambda_.11}
  #allocation0 [shape = 'u32[]', space=smem, size = 0x4, offset = 0x4, fixed_abs, tag = 'smem constant byte address 0x4 - core index']
  #allocation1 [shape = 'u32[144,128]{1,0:T(1,128)}', space=vmem, size = 0x12000, scoped, tag = 'internal scratch']
  %s0 = inlined_call_operand.vmem [shape: f32[8,128], index: 0, kind: input, shape index: {}]
  %s1 = inlined_call_operand.vmem [shape: f32[2,128], index: 1, kind: input, shape index: {}]
  %s2 = inlined_call_operand.hbm [shape: f32[8,128], index: 2, kind: output, shape index: {}]
  %s3 = sld [smem:[#allocation0]]
  $region18: #{_lambda_.11} parent=0
    _
  %s5 = ssub.s32 1, %s3
  %s6 = scalar_select 0, %s5, %s3
  $region1: #{_lambda_.11} parent=0
    #allocation2 [shape = 'u8[4096]{0}', space=vmem, size = 0x1000, scoped, tag = 'output window, operand 0, single buffered']
    #allocation3 [shape = 's32[1]{0}', space=sflag, size = 0x4, scoped, tag = 'scoped memory for _lambda_.11']
    %7 = vsyncpa [#allocation3], 0
    // Predicated region
    $region2: #{_lambda_.11} parent=1 // pred_check
      _
    $region3: #{_lambda_.11} parent=1 // pred_check_branch
      %9 = sbr.rel (0) target = $region5
    $region4: #{_lambda_.11} parent=1 // pred_region
      _
    $region5: #{_lambda_.11} parent=1 // pred_fallthru
      _
    // Predicated region
    $region6: #{_lambda_.11} parent=1 // pred_check
      _
    $region7: #{_lambda_.11} parent=1 // pred_check_branch
      %11 = sbr.rel (0) target = $region9
    $region8: #{_lambda_.11} parent=1 // pred_region
      _
    $region9: #{_lambda_.11} parent=1 // pred_fallthru
      _
    %v12 = vld [vmem:[%s0] sm:$0xff]
    %v13 = vld [vmem:[%s1] sm:$0x1]
    %v14 = vlaneseq
    %v15 = vshrl.u32 %v14, 7
    %v16 = vsub.s32 0, %v15
    %v17 = vrot.slane %v13, %v16
    %v18 = vmul.f32 %v12, %v17
    %v19 = vld [vmem:[%s1 + $0x1] sm:$0x1]
    %v20 = vlaneseq
    %v21 = vshrl.u32 %v20, 7
    %v22 = vsub.s32 0, %v21
    %v23 = vrot.slane %v19, %v22
    %v24 = vadd.f32 %v18, %v23
    %v25 = vmax.f32 %v24, 0.0
    %26 = vst [vmem:[#allocation2] sm:$0xff] %v25
    // Predicated region
    $region10: #{_lambda_.11} parent=1 // pred_check
      _
    $region11: #{_lambda_.11} parent=1 // pred_check_branch
      %28 = sbr.rel (0) target = $region13
    $region12: #{_lambda_.11} parent=1 // pred_region
      %s30 = ssub.s32 128, 128
      %31 = vsyncadd [#allocation3], %s30
      %s33 = sshll.u32 [#allocation2], 4
      %s34 = int_to_ptr.vmem [resolvable:$true] %s33
      %36 = dma.vmem_to_hbm [thread:$0]  %s34, 128, %s2, [#allocation3]
    $region13: #{_lambda_.11} parent=1 // pred_fallthru
      _
    // Predicated region
    $region14: #{_lambda_.11} parent=1 // pred_check
      _
    $region15: #{_lambda_.11} parent=1 // pred_check_branch
      %38 = sbr.rel (0) target = $region17
    $region16: #{_lambda_.11} parent=1 // pred_region
      %39 = dma.done [#allocation3], 128
    $region17: #{_lambda_.11} parent=1 // pred_fallthru
      _
    %40 = vsyncpa [#allocation3], 1

// kernel: _lambda_.6
$region0: #{_lambda_.6}
  #allocation0 [shape = 'u32[]', space=smem, size = 0x4, offset = 0x4, fixed_abs, tag = 'smem constant byte address 0x4 - core index']
  #allocation1 [shape = 'u32[144,128]{1,0:T(1,128)}', space=vmem, size = 0x12000, scoped, tag = 'internal scratch']
  #allocation2 [shape = 'f32[8,128]{1,0:T(8,128)}', space=vmem, size = 0x1000, scoped, tag = 'scratch operand']
  #allocation3 [shape = 'f32[8,128]{1,0:T(8,128)}', space=vmem, size = 0x1000, scoped, tag = 'scratch operand']
  #allocation4 [shape = 'f32[8,128]{1,0:T(8,128)}', space=vmem, size = 0x1000, scoped, tag = 'scratch operand']
  #allocation5 [shape = 'f32[8,128]{1,0:T(8,128)}', space=vmem, size = 0x1000, scoped, tag = 'scratch operand']
  #allocation6 [shape = 'f32[8,128]{1,0:T(8,128)}', space=vmem, size = 0x1000, scoped, tag = 'scratch operand']
  #allocation7 [shape = 'f32[8,128]{1,0:T(8,128)}', space=vmem, size = 0x1000, scoped, tag = 'scratch operand']
  %s0 = inlined_call_operand.vmem [shape: f32[8,128], index: 0, kind: input, shape index: {}, may-alias: {0,1}]
  %s1 = inlined_call_operand.vmem [shape: f32[8,128], index: 1, kind: input, shape index: {}, may-alias: {0,1}]
  %s2 = inlined_call_operand.vmem [shape: bf16[128,256], index: 2, kind: input, shape index: {}]
  %s3 = inlined_call_operand.vmem [shape: f32[1,256], index: 3, kind: input, shape index: {}]
  %s4 = inlined_call_operand.vmem [shape: bf16[128,256], index: 4, kind: input, shape index: {}]
  %s5 = inlined_call_operand.vmem [shape: f32[1,256], index: 5, kind: input, shape index: {}]
  %s6 = inlined_call_operand.vmem [shape: bf16[128,128], index: 6, kind: input, shape index: {}]
  %s7 = inlined_call_operand.vmem [shape: bf16[128,128], index: 7, kind: input, shape index: {}]
  %s8 = inlined_call_operand.vmem [shape: bf16[8,8,128], index: 8, kind: input, shape index: {}]
  %s9 = inlined_call_operand.vmem [shape: bf16[8,8,128], index: 9, kind: input, shape index: {}]
  %s10 = inlined_call_operand.vmem [shape: f32[8,8], index: 10, kind: input, shape index: {}]
  %s11 = inlined_call_operand.vmem [shape: f32[8,8], index: 11, kind: input, shape index: {}]
  %s12 = inlined_call_operand.vmem [shape: bf16[128,128], index: 12, kind: input, shape index: {}]
  %s13 = inlined_call_operand.vmem [shape: bf16[128,128], index: 13, kind: input, shape index: {}]
  %s14 = inlined_call_operand.vmem [shape: f32[1,128], index: 14, kind: input, shape index: {}]
  %s15 = inlined_call_operand.vmem [shape: bf16[128,128], index: 15, kind: input, shape index: {}]
  %s16 = inlined_call_operand.vmem [shape: f32[1,128], index: 16, kind: input, shape index: {}]
  %s17 = inlined_call_operand.vmem [shape: f32[8,128], index: 17, kind: output, shape index: {}]
  %s18 = sld [smem:[#allocation0]]
  $region86: #{_lambda_.6} parent=0
    _
  %s20 = ssub.s32 1, %s18
  %s21 = scalar_select 0, %s20, %s18
  // Predicated region
  $region2: #{_lambda_.6} parent=0 // pred_check
    _
  $region3: #{_lambda_.6} parent=0 // pred_check_branch
    %23 = sbr.rel (0) target = $region5
  $region4: #{_lambda_.6} parent=0 // pred_region
    _
  $region5: #{_lambda_.6} parent=0 // pred_fallthru
    _
  // Predicated region
  $region6: #{_lambda_.6} parent=0 // pred_check
    _
  $region7: #{_lambda_.6} parent=0 // pred_check_branch
    %25 = sbr.rel (0) target = $region9
  $region8: #{_lambda_.6} parent=0 // pred_region
    _
  $region9: #{_lambda_.6} parent=0 // pred_fallthru
    _
  // Predicated region
  $region10: #{_lambda_.6} parent=0 // pred_check
    _
  $region11: #{_lambda_.6} parent=0 // pred_check_branch
    %27 = sbr.rel (0) target = $region13
  $region12: #{_lambda_.6} parent=0 // pred_region
    _
  $region13: #{_lambda_.6} parent=0 // pred_fallthru
    _
  // Predicated region
  $region14: #{_lambda_.6} parent=0 // pred_check
    _
  $region15: #{_lambda_.6} parent=0 // pred_check_branch
    %29 = sbr.rel (0) target = $region17
  $region16: #{_lambda_.6} parent=0 // pred_region
    _
  $region17: #{_lambda_.6} parent=0 // pred_fallthru
    _
  // Predicated region
  $region18: #{_lambda_.6} parent=0 // pred_check
    _
  $region19: #{_lambda_.6} parent=0 // pred_check_branch
    %31 = sbr.rel (0) target = $region21
  $region20: #{_lambda_.6} parent=0 // pred_region
    _
  $region21: #{_lambda_.6} parent=0 // pred_fallthru
    _
  // Predicated region
  $region22: #{_lambda_.6} parent=0 // pred_check
    _
  $region23: #{_lambda_.6} parent=0 // pred_check_branch
    %33 = sbr.rel (0) target = $region25
  $region24: #{_lambda_.6} parent=0 // pred_region
    _
  $region25: #{_lambda_.6} parent=0 // pred_fallthru
    _
  // Predicated region
  $region26: #{_lambda_.6} parent=0 // pred_check
    _
  $region27: #{_lambda_.6} parent=0 // pred_check_branch
    %35 = sbr.rel (0) target = $region29
  $region28: #{_lambda_.6} parent=0 // pred_region
    _
  $region29: #{_lambda_.6} parent=0 // pred_fallthru
    _
  // Predicated region
  $region30: #{_lambda_.6} parent=0 // pred_check
    _
  $region31: #{_lambda_.6} parent=0 // pred_check_branch
    %37 = sbr.rel (0) target = $region33
  $region32: #{_lambda_.6} parent=0 // pred_region
    _
  $region33: #{_lambda_.6} parent=0 // pred_fallthru
    _
  // Predicated region
  $region34: #{_lambda_.6} parent=0 // pred_check
    _
  $region35: #{_lambda_.6} parent=0 // pred_check_branch
    %39 = sbr.rel (0) target = $region37
  $region36: #{_lambda_.6} parent=0 // pred_region
    _
  $region37: #{_lambda_.6} parent=0 // pred_fallthru
    _
  // Predicated region
  $region38: #{_lambda_.6} parent=0 // pred_check
    _
  $region39: #{_lambda_.6} parent=0 // pred_check_branch
    %41 = sbr.rel (0) target = $region41
  $region40: #{_lambda_.6} parent=0 // pred_region
    _
  $region41: #{_lambda_.6} parent=0 // pred_fallthru
    _
  // Predicated region
  $region42: #{_lambda_.6} parent=0 // pred_check
    _
  $region43: #{_lambda_.6} parent=0 // pred_check_branch
    %43 = sbr.rel (0) target = $region45
  $region44: #{_lambda_.6} parent=0 // pred_region
    _
  $region45: #{_lambda_.6} parent=0 // pred_fallthru
    _
  // Predicated region
  $region46: #{_lambda_.6} parent=0 // pred_check
    _
  $region47: #{_lambda_.6} parent=0 // pred_check_branch
    %45 = sbr.rel (0) target = $region49
  $region48: #{_lambda_.6} parent=0 // pred_region
    _
  $region49: #{_lambda_.6} parent=0 // pred_fallthru
    _
  // Predicated region
  $region50: #{_lambda_.6} parent=0 // pred_check
    _
  $region51: #{_lambda_.6} parent=0 // pred_check_branch
    %47 = sbr.rel (0) target = $region53
  $region52: #{_lambda_.6} parent=0 // pred_region
    _
  $region53: #{_lambda_.6} parent=0 // pred_fallthru
    _
  // Predicated region
  $region54: #{_lambda_.6} parent=0 // pred_check
    _
  $region55: #{_lambda_.6} parent=0 // pred_check_branch
    %49 = sbr.rel (0) target = $region57
  $region56: #{_lambda_.6} parent=0 // pred_region
    _
  $region57: #{_lambda_.6} parent=0 // pred_fallthru
    _
  // Predicated region
  $region58: #{_lambda_.6} parent=0 // pred_check
    _
  $region59: #{_lambda_.6} parent=0 // pred_check_branch
    %51 = sbr.rel (0) target = $region61
  $region60: #{_lambda_.6} parent=0 // pred_region
    _
  $region61: #{_lambda_.6} parent=0 // pred_fallthru
    _
  // Predicated region
  $region62: #{_lambda_.6} parent=0 // pred_check
    _
  $region63: #{_lambda_.6} parent=0 // pred_check_branch
    %53 = sbr.rel (0) target = $region65
  $region64: #{_lambda_.6} parent=0 // pred_region
    _
  $region65: #{_lambda_.6} parent=0 // pred_fallthru
    _
  // Predicated region
  $region66: #{_lambda_.6} parent=0 // pred_check
    _
  $region67: #{_lambda_.6} parent=0 // pred_check_branch
    %55 = sbr.rel (0) target = $region69
  $region68: #{_lambda_.6} parent=0 // pred_region
    _
  $region69: #{_lambda_.6} parent=0 // pred_fallthru
    _
  %p57 = scmp.eq.s32.totalorder 0, 0
  // Predicated region
  $region70: #{_lambda_.6} parent=0 // pred_check
    %p58 = pneg %p57
  $region71: #{_lambda_.6} parent=0 // pred_check_branch
    %60 = sbr.rel (%p58) target = $region73
  $region72: #{_lambda_.6} parent=0 // pred_region
    %61 = vst [vmem:[#allocation2] sm:$0xff] -1e+30
    %62 = vst [vmem:[#allocation5] sm:$0xff] -1e+30
    %63 = vst [vmem:[#allocation3] sm:$0xff] 0.0
    %64 = vst [vmem:[#allocation4] sm:$0xff] 0.0
    %65 = vst [vmem:[#allocation6] sm:$0xff] 0.0
    %66 = vst [vmem:[#allocation7] sm:$0xff] 0.0
  $region73: #{_lambda_.6} parent=0 // pred_fallthru
    _
  %v67 = vld [vmem:[%s0] sm:$0xff]
  %v68 = vpack.c.bf16 %v67, %v67
  %v69 = vld [vmem:[%s1] sm:$0xff]
  %v70 = vpack.c.bf16 %v69, %v69
  %v71 = vld [vmem:[%s4] sm:$0xff]
  %v72 = vld [vmem:[%s4 + $0x8] sm:$0xff]
  %v73 = vld [vmem:[%s4 + $0x10] sm:$0xff]
  %v74 = vld [vmem:[%s4 + $0x18] sm:$0xff]
  %v75 = vld [vmem:[%s4 + $0x20] sm:$0xff]
  %v76 = vld [vmem:[%s4 + $0x28] sm:$0xff]
  %v77 = vld [vmem:[%s4 + $0x30] sm:$0xff]
  %v78 = vld [vmem:[%s4 + $0x38] sm:$0xff]
  %v79 = vld [vmem:[%s4 + $0x40] sm:$0xff]
  %v80 = vld [vmem:[%s4 + $0x48] sm:$0xff]
  %v81 = vld [vmem:[%s4 + $0x50] sm:$0xff]
  %v82 = vld [vmem:[%s4 + $0x58] sm:$0xff]
  %v83 = vld [vmem:[%s4 + $0x60] sm:$0xff]
  %v84 = vld [vmem:[%s4 + $0x68] sm:$0xff]
  %v85 = vld [vmem:[%s4 + $0x70] sm:$0xff]
  %v86 = vld [vmem:[%s4 + $0x78] sm:$0xff]
  %v87 = vld [vmem:[%s5] sm:$0x3]
  %v89 = vlaneseq
  %v90 = vshrl.u32 %v89, 7
  %v91 = vsub.s32 0, %v90
  %v92 = vrot.slane %v87, %v91
  %v93 = vlaneseq
  %v94 = vshrl.u32 %v93, 7
  %v95 = vsub.s32 1, %v94
  %v96 = vrot.slane %v87, %v95
  %v115 = vunpack.c.l.b16 %v71
  %v116 = vunpack.c.h.b16 %v71
  %v117 = vunpack.c.l.b16 %v72
  %v118 = vunpack.c.h.b16 %v72
  %v119 = vunpack.c.l.b16 %v73
  %v120 = vunpack.c.h.b16 %v73
  %v121 = vunpack.c.l.b16 %v74
  %v122 = vunpack.c.h.b16 %v74
  %v123 = vunpack.c.l.b16 %v75
  %v124 = vunpack.c.h.b16 %v75
  %v125 = vunpack.c.l.b16 %v76
  %v126 = vunpack.c.h.b16 %v76
  %v127 = vunpack.c.l.b16 %v77
  %v128 = vunpack.c.h.b16 %v77
  %v129 = vunpack.c.l.b16 %v78
  %v130 = vunpack.c.h.b16 %v78
  %v131 = vunpack.c.l.b16 %v79
  %v132 = vunpack.c.h.b16 %v79
  %v133 = vunpack.c.l.b16 %v80
  %v134 = vunpack.c.h.b16 %v80
  %v135 = vunpack.c.l.b16 %v81
  %v136 = vunpack.c.h.b16 %v81
  %v137 = vunpack.c.l.b16 %v82
  %v138 = vunpack.c.h.b16 %v82
  %v139 = vunpack.c.l.b16 %v83
  %v140 = vunpack.c.h.b16 %v83
  %v141 = vunpack.c.l.b16 %v84
  %v142 = vunpack.c.h.b16 %v84
  %v143 = vunpack.c.l.b16 %v85
  %v144 = vunpack.c.h.b16 %v85
  %v145 = vunpack.c.l.b16 %v86
  %v146 = vunpack.c.h.b16 %v86
  %v147 = vpack.c.b16 %v117, %v115
  %v148 = vpack.c.b16 %v118, %v116
  %v149 = vpack.c.b16 %v121, %v119
  %v150 = vpack.c.b16 %v122, %v120
  %v151 = vpack.c.b16 %v125, %v123
  %v152 = vpack.c.b16 %v126, %v124
  %v153 = vpack.c.b16 %v129, %v127
  %v154 = vpack.c.b16 %v130, %v128
  %v155 = vpack.c.b16 %v133, %v131
  %v156 = vpack.c.b16 %v134, %v132
  %v157 = vpack.c.b16 %v137, %v135
  %v158 = vpack.c.b16 %v138, %v136
  %v159 = vpack.c.b16 %v141, %v139
  %v160 = vpack.c.b16 %v142, %v140
  %v161 = vpack.c.b16 %v145, %v143
  %v162 = vpack.c.b16 %v146, %v144
  %179 = vmatprep.subr.bf16.mxu0 %v162
  %180 = vmatpush1.bf16.msra.mxu0 %v161
  %181 = vmatprep.subr.bf16.mxu0 %v160
  %182 = vmatpush1.bf16.msra.mxu0 %v159
  %183 = vmatprep.subr.bf16.mxu0 %v158
  %184 = vmatpush1.bf16.msra.mxu0 %v157
  %185 = vmatprep.subr.bf16.mxu0 %v156
  %186 = vmatpush1.bf16.msra.mxu0 %v155
  %187 = vmatprep.subr.bf16.mxu0 %v154
  %188 = vmatpush1.bf16.msra.mxu0 %v153
  %189 = vmatprep.subr.bf16.mxu0 %v152
  %190 = vmatpush1.bf16.msra.mxu0 %v151
  %191 = vmatprep.subr.bf16.mxu0 %v150
  %192 = vmatpush1.bf16.msra.mxu0 %v149
  %193 = vmatprep.subr.bf16.mxu0 %v148
  %194 = vmatpush1.bf16.msra.mxu0 %v147
  %195 = vmatprep.subr.bf16.mxu0 0
  %196 = vmatpush2.bf16.msra.mxu0 0
  %197 = vmatprep.subr.bf16.mxu0 0
  %198 = vmatpush2.bf16.msra.mxu0 0
  %199 = vmatprep.subr.bf16.mxu0 0
  %200 = vmatpush2.bf16.msra.mxu0 0
  %201 = vmatprep.subr.bf16.mxu0 0
  %202 = vmatpush2.bf16.msra.mxu0 0
  %203 = vmatprep.subr.bf16.mxu0 0
  %204 = vmatpush2.bf16.msra.mxu0 0
  %205 = vmatprep.subr.bf16.mxu0 0
  %206 = vmatpush2.bf16.msra.mxu0 0
  %207 = vmatprep.subr.bf16.mxu0 0
  %208 = vmatpush2.bf16.msra.mxu0 0
  %209 = vmatprep.subr.bf16.mxu0 0
  %210 = vmatpush2.bf16.msra.mxu0 0
  %211 = vmatprep.mubr.bf16.mxu0 0
  %212 = vmatmul.mubr.bf16.gmra.mxu0 %v68
  %v213 = vpop.f32.mrf.mxu0
  %v214 = vadd.f32 %v92, %v213
  %v215 = vpop.f32.mrf.mxu0
  %v216 = vadd.f32 %v96, %v215
  %v217 = vpop.f32.mrf.mxu0
  %v218 = vpop.f32.mrf.mxu0
  %219 = vdwg.mxu0
  %v220 = vld [vmem:[%s2] sm:$0xff]
  %v221 = vld [vmem:[%s2 + $0x8] sm:$0xff]
  %v222 = vld [vmem:[%s2 + $0x10] sm:$0xff]
  %v223 = vld [vmem:[%s2 + $0x18] sm:$0xff]
  %v224 = vld [vmem:[%s2 + $0x20] sm:$0xff]
  %v225 = vld [vmem:[%s2 + $0x28] sm:$0xff]
  %v226 = vld [vmem:[%s2 + $0x30] sm:$0xff]
  %v227 = vld [vmem:[%s2 + $0x38] sm:$0xff]
  %v228 = vld [vmem:[%s2 + $0x40] sm:$0xff]
  %v229 = vld [vmem:[%s2 + $0x48] sm:$0xff]
  %v230 = vld [vmem:[%s2 + $0x50] sm:$0xff]
  %v231 = vld [vmem:[%s2 + $0x58] sm:$0xff]
  %v232 = vld [vmem:[%s2 + $0x60] sm:$0xff]
  %v233 = vld [vmem:[%s2 + $0x68] sm:$0xff]
  %v234 = vld [vmem:[%s2 + $0x70] sm:$0xff]
  %v235 = vld [vmem:[%s2 + $0x78] sm:$0xff]
  %v236 = vld [vmem:[%s3] sm:$0x3]
  %v238 = vlaneseq
  %v239 = vshrl.u32 %v238, 7
  %v240 = vsub.s32 0, %v239
  %v241 = vrot.slane %v236, %v240
  %v242 = vlaneseq
  %v243 = vshrl.u32 %v242, 7
  %v244 = vsub.s32 1, %v243
  %v245 = vrot.slane %v236, %v244
  %v264 = vunpack.c.l.b16 %v220
  %v265 = vunpack.c.h.b16 %v220
  %v266 = vunpack.c.l.b16 %v221
  %v267 = vunpack.c.h.b16 %v221
  %v268 = vunpack.c.l.b16 %v222
  %v269 = vunpack.c.h.b16 %v222
  %v270 = vunpack.c.l.b16 %v223
  %v271 = vunpack.c.h.b16 %v223
  %v272 = vunpack.c.l.b16 %v224
  %v273 = vunpack.c.h.b16 %v224
  %v274 = vunpack.c.l.b16 %v225
  %v275 = vunpack.c.h.b16 %v225
  %v276 = vunpack.c.l.b16 %v226
  %v277 = vunpack.c.h.b16 %v226
  %v278 = vunpack.c.l.b16 %v227
  %v279 = vunpack.c.h.b16 %v227
  %v280 = vunpack.c.l.b16 %v228
  %v281 = vunpack.c.h.b16 %v228
  %v282 = vunpack.c.l.b16 %v229
  %v283 = vunpack.c.h.b16 %v229
  %v284 = vunpack.c.l.b16 %v230
  %v285 = vunpack.c.h.b16 %v230
  %v286 = vunpack.c.l.b16 %v231
  %v287 = vunpack.c.h.b16 %v231
  %v288 = vunpack.c.l.b16 %v232
  %v289 = vunpack.c.h.b16 %v232
  %v290 = vunpack.c.l.b16 %v233
  %v291 = vunpack.c.h.b16 %v233
  %v292 = vunpack.c.l.b16 %v234
  %v293 = vunpack.c.h.b16 %v234
  %v294 = vunpack.c.l.b16 %v235
  %v295 = vunpack.c.h.b16 %v235
  %v296 = vpack.c.b16 %v266, %v264
  %v297 = vpack.c.b16 %v267, %v265
  %v298 = vpack.c.b16 %v270, %v268
  %v299 = vpack.c.b16 %v271, %v269
  %v300 = vpack.c.b16 %v274, %v272
  %v301 = vpack.c.b16 %v275, %v273
  %v302 = vpack.c.b16 %v278, %v276
  %v303 = vpack.c.b16 %v279, %v277
  %v304 = vpack.c.b16 %v282, %v280
  %v305 = vpack.c.b16 %v283, %v281
  %v306 = vpack.c.b16 %v286, %v284
  %v307 = vpack.c.b16 %v287, %v285
  %v308 = vpack.c.b16 %v290, %v288
  %v309 = vpack.c.b16 %v291, %v289
  %v310 = vpack.c.b16 %v294, %v292
  %v311 = vpack.c.b16 %v295, %v293
  %328 = vmatprep.subr.bf16.mxu0 %v311
  %329 = vmatpush1.bf16.msra.mxu0 %v310
  %330 = vmatprep.subr.bf16.mxu0 %v309
  %331 = vmatpush1.bf16.msra.mxu0 %v308
  %332 = vmatprep.subr.bf16.mxu0 %v307
  %333 = vmatpush1.bf16.msra.mxu0 %v306
  %334 = vmatprep.subr.bf16.mxu0 %v305
  %335 = vmatpush1.bf16.msra.mxu0 %v304
  %336 = vmatprep.subr.bf16.mxu0 %v303
  %337 = vmatpush1.bf16.msra.mxu0 %v302
  %338 = vmatprep.subr.bf16.mxu0 %v301
  %339 = vmatpush1.bf16.msra.mxu0 %v300
  %340 = vmatprep.subr.bf16.mxu0 %v299
  %341 = vmatpush1.bf16.msra.mxu0 %v298
  %342 = vmatprep.subr.bf16.mxu0 %v297
  %343 = vmatpush1.bf16.msra.mxu0 %v296
  %344 = vmatprep.subr.bf16.mxu0 0
  %345 = vmatpush2.bf16.msra.mxu0 0
  %346 = vmatprep.subr.bf16.mxu0 0
  %347 = vmatpush2.bf16.msra.mxu0 0
  %348 = vmatprep.subr.bf16.mxu0 0
  %349 = vmatpush2.bf16.msra.mxu0 0
  %350 = vmatprep.subr.bf16.mxu0 0
  %351 = vmatpush2.bf16.msra.mxu0 0
  %352 = vmatprep.subr.bf16.mxu0 0
  %353 = vmatpush2.bf16.msra.mxu0 0
  %354 = vmatprep.subr.bf16.mxu0 0
  %355 = vmatpush2.bf16.msra.mxu0 0
  %356 = vmatprep.subr.bf16.mxu0 0
  %357 = vmatpush2.bf16.msra.mxu0 0
  %358 = vmatprep.subr.bf16.mxu0 0
  %359 = vmatpush2.bf16.msra.mxu0 0
  %360 = vmatprep.mubr.bf16.mxu0 0
  %361 = vmatmul.mubr.bf16.gmra.mxu0 %v70
  %v362 = vpop.f32.mrf.mxu0
  %v363 = vadd.f32 %v241, %v362
  %v364 = vpop.f32.mrf.mxu0
  %v365 = vadd.f32 %v245, %v364
  %v366 = vpop.f32.mrf.mxu0
  %v367 = vpop.f32.mrf.mxu0
  %368 = vdwg.mxu0
  %v370 = vcombine.high %v214, %v214
  %v372 = vunpack.c.l.s4 1966171168
  %v373 = vunpack.c.0.s8 %v372
  %v374 = vlaneseq
  %v375 = vshrl.u32 %v374, 7
  %v376 = vsub.s32 %v373, %v375
  %v377 = vrot.slane %v214, %v376
  %v379 = vunpack.c.l.s4 1966171168
  %v380 = vunpack.c.0.s8 %v379
  %v381 = vlaneseq
  %v382 = vshrl.u32 %v381, 7
  %v383 = vsub.s32 %v380, %v382
  %v384 = vrot.slane %v370, %v383
  %v385 = vcombine.high %v377, %v377
  %v386 = vcombine.high %v384, %v384
  %v388 = vunpack.c.l.s4 1966171168
  %v389 = vunpack.c.0.s8 %v388
  %v390 = vlaneseq
  %v391 = vshrl.u32 %v390, 7
  %v392 = vsub.s32 %v389, %v391
  %v393 = vrot.slane %v377, %v392
  %v395 = vunpack.c.l.s4 1966171168
  %v396 = vunpack.c.0.s8 %v395
  %v397 = vlaneseq
  %v398 = vshrl.u32 %v397, 7
  %v399 = vsub.s32 %v396, %v398
  %v400 = vrot.slane %v384, %v399
  %v402 = vunpack.c.l.s4 1966171168
  %v403 = vunpack.c.0.s8 %v402
  %v404 = vlaneseq
  %v405 = vshrl.u32 %v404, 7
  %v406 = vsub.s32 %v403, %v405
  %v407 = vrot.slane %v385, %v406
  %v409 = vunpack.c.l.s4 1966171168
  %v410 = vunpack.c.0.s8 %v409
  %v411 = vlaneseq
  %v412 = vshrl.u32 %v411, 7
  %v413 = vsub.s32 %v410, %v412
  %v414 = vrot.slane %v386, %v413
  %v415 = vcombine.high %v393, %v393
  %v416 = vcombine.high %v400, %v400
  %v417 = vcombine.high %v407, %v407
  %v418 = vcombine.high %v414, %v414
  %v419 = vlaneseq
  %v420 = vshrl.u32 %v419, 7
  %v421 = vsub.s32 0, %v420
  %v422 = vrot.slane %v393, %v421
  %v423 = vlaneseq
  %v424 = vshrl.u32 %v423, 7
  %v425 = vsub.s32 0, %v424
  %v426 = vrot.slane %v407, %v425
  %v427 = vlaneseq
  %v428 = vshrl.u32 %v427, 7
  %v429 = vsub.s32 0, %v428
  %v430 = vrot.slane %v415, %v429
  %v431 = vlaneseq
  %v432 = vshrl.u32 %v431, 7
  %v433 = vsub.s32 0, %v432
  %v434 = vrot.slane %v417, %v433
  %v435 = vlaneseq
  %v436 = vshrl.u32 %v435, 7
  %v437 = vsub.s32 0, %v436
  %v438 = vrot.slane %v400, %v437
  %v439 = vlaneseq
  %v440 = vshrl.u32 %v439, 7
  %v441 = vsub.s32 0, %v440
  %v442 = vrot.slane %v414, %v441
  %v443 = vlaneseq
  %v444 = vshrl.u32 %v443, 7
  %v445 = vsub.s32 0, %v444
  %v446 = vrot.slane %v416, %v445
  %v447 = vlaneseq
  %v448 = vshrl.u32 %v447, 7
  %v449 = vsub.s32 0, %v448
  %v450 = vrot.slane %v418, %v449
  %v459 = vadd.f32 %v422, %v363
  %v460 = vadd.f32 %v426, %v363
  %v461 = vadd.f32 %v430, %v363
  %v462 = vadd.f32 %v434, %v363
  %v463 = vadd.f32 %v438, %v363
  %v464 = vadd.f32 %v442, %v363
  %v465 = vadd.f32 %v446, %v363
  %v466 = vadd.f32 %v450, %v363
  %v467 = vld [vmem:[%s8] sm:$0xf]
  %v468 = vld [vmem:[%s8 + $0x4] sm:$0xf]
  %v469 = vld [vmem:[%s8 + $0x8] sm:$0xf]
  %v470 = vld [vmem:[%s8 + $0xc] sm:$0xf]
  %v471 = vld [vmem:[%s8 + $0x10] sm:$0xf]
  %v472 = vld [vmem:[%s8 + $0x14] sm:$0xf]
  %v473 = vld [vmem:[%s8 + $0x18] sm:$0xf]
  %v474 = vld [vmem:[%s8 + $0x1c] sm:$0xf]
  %v475 = vunpack.c.l.bf16 %v467
  %v476 = vunpack.c.l.bf16 %v468
  %v477 = vunpack.c.l.bf16 %v469
  %v478 = vunpack.c.l.bf16 %v470
  %v479 = vunpack.c.l.bf16 %v471
  %v480 = vunpack.c.l.bf16 %v472
  %v481 = vunpack.c.l.bf16 %v473
  %v482 = vunpack.c.l.bf16 %v474
  %v483 = vadd.f32 %v459, %v475
  %v484 = vadd.f32 %v460, %v476
  %v485 = vadd.f32 %v461, %v477
  %v486 = vadd.f32 %v462, %v478
  %v487 = vadd.f32 %v463, %v479
  %v488 = vadd.f32 %v464, %v480
  %v489 = vadd.f32 %v465, %v481
  %v490 = vadd.f32 %v466, %v482
  %vm491 = vcmp.gt.f32.partialorder %v483, 0.0
  %vm492 = vcmp.gt.f32.partialorder %v484, 0.0
  %vm493 = vcmp.gt.f32.partialorder %v485, 0.0
  %vm494 = vcmp.gt.f32.partialorder %v486, 0.0
  %vm495 = vcmp.gt.f32.partialorder %v487, 0.0
  %vm496 = vcmp.gt.f32.partialorder %v488, 0.0
  %vm497 = vcmp.gt.f32.partialorder %v489, 0.0
  %vm498 = vcmp.gt.f32.partialorder %v490, 0.0
  %v499 = vmul.f32 %v483, 0.2
  %v500 = vmul.f32 %v484, 0.2
  %v501 = vmul.f32 %v485, 0.2
  %v502 = vmul.f32 %v486, 0.2
  %v503 = vmul.f32 %v487, 0.2
  %v504 = vmul.f32 %v488, 0.2
  %v505 = vmul.f32 %v489, 0.2
  %v506 = vmul.f32 %v490, 0.2
  %v507 = vsel %vm491, %v483, %v499
  %v508 = vsel %vm492, %v484, %v500
  %v509 = vsel %vm493, %v485, %v501
  %v510 = vsel %vm494, %v486, %v502
  %v511 = vsel %vm495, %v487, %v503
  %v512 = vsel %vm496, %v488, %v504
  %v513 = vsel %vm497, %v489, %v505
  %v514 = vsel %vm498, %v490, %v506
  %v515 = vpack.c.bf16 %v508, %v507
  %v516 = vpack.c.bf16 %v510, %v509
  %v517 = vpack.c.bf16 %v512, %v511
  %v518 = vpack.c.bf16 %v514, %v513
  %v519 = vld [vmem:[%s6] sm:$0xf]
  %v520 = vld [vmem:[%s6 + $0x4] sm:$0xf]
  %v521 = vld [vmem:[%s6 + $0x8] sm:$0xf]
  %v522 = vld [vmem:[%s6 + $0xc] sm:$0xf]
  %v523 = vld [vmem:[%s6 + $0x10] sm:$0xf]
  %v524 = vld [vmem:[%s6 + $0x14] sm:$0xf]
  %v525 = vld [vmem:[%s6 + $0x18] sm:$0xf]
  %v526 = vld [vmem:[%s6 + $0x1c] sm:$0xf]
  %v527 = vld [vmem:[%s6 + $0x20] sm:$0xf]
  %v528 = vld [vmem:[%s6 + $0x24] sm:$0xf]
  %v529 = vld [vmem:[%s6 + $0x28] sm:$0xf]
  %v530 = vld [vmem:[%s6 + $0x2c] sm:$0xf]
  %v531 = vld [vmem:[%s6 + $0x30] sm:$0xf]
  %v532 = vld [vmem:[%s6 + $0x34] sm:$0xf]
  %v533 = vld [vmem:[%s6 + $0x38] sm:$0xf]
  %v534 = vld [vmem:[%s6 + $0x3c] sm:$0xf]
  %v551 = vunpack.c.l.b16 %v519
  %v552 = vunpack.c.l.b16 %v520
  %v553 = vunpack.c.l.b16 %v521
  %v554 = vunpack.c.l.b16 %v522
  %v555 = vunpack.c.l.b16 %v523
  %v556 = vunpack.c.l.b16 %v524
  %v557 = vunpack.c.l.b16 %v525
  %v558 = vunpack.c.l.b16 %v526
  %v559 = vunpack.c.l.b16 %v527
  %v560 = vunpack.c.l.b16 %v528
  %v561 = vunpack.c.l.b16 %v529
  %v562 = vunpack.c.l.b16 %v530
  %v563 = vunpack.c.l.b16 %v531
  %v564 = vunpack.c.l.b16 %v532
  %v565 = vunpack.c.l.b16 %v533
  %v566 = vunpack.c.l.b16 %v534
  %v567 = vpack.c.b16 %v552, %v551
  %v568 = vpack.c.b16 %v554, %v553
  %v569 = vpack.c.b16 %v556, %v555
  %v570 = vpack.c.b16 %v558, %v557
  %v571 = vpack.c.b16 %v560, %v559
  %v572 = vpack.c.b16 %v562, %v561
  %v573 = vpack.c.b16 %v564, %v563
  %v574 = vpack.c.b16 %v566, %v565
  %583 = vmatprep.subr.bf16.mxu0 0
  %584 = vmatpush1.bf16.msra.mxu0 %v574
  %585 = vmatprep.subr.bf16.mxu0 0
  %586 = vmatpush1.bf16.msra.mxu0 %v573
  %587 = vmatprep.subr.bf16.mxu0 0
  %588 = vmatpush1.bf16.msra.mxu0 %v572
  %589 = vmatprep.subr.bf16.mxu0 0
  %590 = vmatpush1.bf16.msra.mxu0 %v571
  %591 = vmatprep.subr.bf16.mxu0 0
  %592 = vmatpush1.bf16.msra.mxu0 %v570
  %593 = vmatprep.subr.bf16.mxu0 0
  %594 = vmatpush1.bf16.msra.mxu0 %v569
  %595 = vmatprep.subr.bf16.mxu0 0
  %596 = vmatpush1.bf16.msra.mxu0 %v568
  %597 = vmatprep.subr.bf16.mxu0 0
  %598 = vmatpush1.bf16.msra.mxu0 %v567
  %599 = vmatprep.subr.bf16.mxu0 0
  %600 = vmatpush2.bf16.msra.mxu0 0
  %601 = vmatprep.subr.bf16.mxu0 0
  %602 = vmatpush2.bf16.msra.mxu0 0
  %603 = vmatprep.subr.bf16.mxu0 0
  %604 = vmatpush2.bf16.msra.mxu0 0
  %605 = vmatprep.subr.bf16.mxu0 0
  %606 = vmatpush2.bf16.msra.mxu0 0
  %607 = vmatprep.subr.bf16.mxu0 0
  %608 = vmatpush2.bf16.msra.mxu0 0
  %609 = vmatprep.subr.bf16.mxu0 0
  %610 = vmatpush2.bf16.msra.mxu0 0
  %611 = vmatprep.subr.bf16.mxu0 0
  %612 = vmatpush2.bf16.msra.mxu0 0
  %613 = vmatprep.subr.bf16.mxu0 0
  %614 = vmatpush2.bf16.msra.mxu0 0
  %615 = vmatprep.mubr.bf16.mxu0 0
  %616 = vmatmul.mubr.bf16.gmra.mxu0 %v515
  %v617 = vpop.f32.mrf.mxu0
  %v618 = vadd.f32 0.0, %v617
  %v619 = vpop.f32.mrf.mxu0
  %v620 = vpop.f32.mrf.mxu0
  %v621 = vadd.f32 0.0, %v620
  %v622 = vpop.f32.mrf.mxu0
  %623 = vmatprep.mubr.bf16.mxu0 0
  %624 = vmatmul.mubr.bf16.gmra.mxu0 %v516
  %v625 = vpop.f32.mrf.mxu0
  %v626 = vadd.f32 0.0, %v625
  %v627 = vpop.f32.mrf.mxu0
  %v628 = vpop.f32.mrf.mxu0
  %v629 = vadd.f32 0.0, %v628
  %v630 = vpop.f32.mrf.mxu0
  %631 = vmatprep.mubr.bf16.mxu0 0
  %632 = vmatmul.mubr.bf16.gmra.mxu0 %v517
  %v633 = vpop.f32.mrf.mxu0
  %v634 = vadd.f32 0.0, %v633
  %v635 = vpop.f32.mrf.mxu0
  %v636 = vpop.f32.mrf.mxu0
  %v637 = vadd.f32 0.0, %v636
  %v638 = vpop.f32.mrf.mxu0
  %639 = vmatprep.mubr.bf16.mxu0 0
  %640 = vmatmul.mubr.bf16.gmra.mxu0 %v518
  %v641 = vpop.f32.mrf.mxu0
  %v642 = vadd.f32 0.0, %v641
  %v643 = vpop.f32.mrf.mxu0
  %v644 = vpop.f32.mrf.mxu0
  %v645 = vadd.f32 0.0, %v644
  %v646 = vpop.f32.mrf.mxu0
  %647 = vdwg.mxu0
  %v648 = vld [vmem:[%s10] sm:$0xff]
  %v649 = vlaneseq
  %v650 = vshrl.u32 %v649, 7
  %v651 = vsub.s32 0, %v650
  %v652 = vrot.slane %v648, %v651
  %654 = vbcast.lane.b32.xlu0 %v652, 256
  %v655 = vpop.permute.xlu0 %654
  %v656 = vlaneseq
  %v657 = vshrl.u32 %v656, 7
  %v658 = vsub.s32 1, %v657
  %v659 = vrot.slane %v648, %v658
  %661 = vbcast.lane.b32.xlu0 %v659, 256
  %v662 = vpop.permute.xlu0 %661
  %v663 = vlaneseq
  %v664 = vshrl.u32 %v663, 7
  %v665 = vsub.s32 2, %v664
  %v666 = vrot.slane %v648, %v665
  %668 = vbcast.lane.b32.xlu0 %v666, 256
  %v669 = vpop.permute.xlu0 %668
  %v670 = vlaneseq
  %v671 = vshrl.u32 %v670, 7
  %v672 = vsub.s32 3, %v671
  %v673 = vrot.slane %v648, %v672
  %675 = vbcast.lane.b32.xlu0 %v673, 256
  %v676 = vpop.permute.xlu0 %675
  %v677 = vlaneseq
  %v678 = vshrl.u32 %v677, 7
  %v679 = vsub.s32 4, %v678
  %v680 = vrot.slane %v648, %v679
  %682 = vbcast.lane.b32.xlu0 %v680, 256
  %v683 = vpop.permute.xlu0 %682
  %v684 = vlaneseq
  %v685 = vshrl.u32 %v684, 7
  %v686 = vsub.s32 5, %v685
  %v687 = vrot.slane %v648, %v686
  %689 = vbcast.lane.b32.xlu0 %v687, 256
  %v690 = vpop.permute.xlu0 %689
  %v691 = vlaneseq
  %v692 = vshrl.u32 %v691, 7
  %v693 = vsub.s32 6, %v692
  %v694 = vrot.slane %v648, %v693
  %696 = vbcast.lane.b32.xlu0 %v694, 256
  %v697 = vpop.permute.xlu0 %696
  %v698 = vlaneseq
  %v699 = vshrl.u32 %v698, 7
  %v700 = vsub.s32 7, %v699
  %v701 = vrot.slane %v648, %v700
  %703 = vbcast.lane.b32.xlu0 %v701, 256
  %v704 = vpop.permute.xlu0 %703
  %v705 = vadd.f32 %v618, %v655
  %v706 = vadd.f32 %v621, %v662
  %v707 = vadd.f32 %v626, %v669
  %v708 = vadd.f32 %v629, %v676
  %v709 = vadd.f32 %v634, %v683
  %v710 = vadd.f32 %v637, %v690
  %v711 = vadd.f32 %v642, %v697
  %v712 = vadd.f32 %v645, %v704
  %v713 = vld [vmem:[#allocation2] sm:$0xff]
  %v714 = vrot.slane %v705, 4
  %v715 = vmax.f32 %v705, %v714
  %v716 = vrot.slane %v715, 2
  %v717 = vmax.f32 %v715, %v716
  %v718 = vrot.slane %v717, 1
  %v719 = vmax.f32 %v717, %v718
  %v720 = vrot.slane %v706, 4
  %v721 = vmax.f32 %v706, %v720
  %v722 = vrot.slane %v721, 2
  %v723 = vmax.f32 %v721, %v722
  %v724 = vrot.slane %v723, 1
  %v725 = vmax.f32 %v723, %v724
  %v726 = vrot.slane %v707, 4
  %v727 = vmax.f32 %v707, %v726
  %v728 = vrot.slane %v727, 2
  %v729 = vmax.f32 %v727, %v728
  %v730 = vrot.slane %v729, 1
  %v731 = vmax.f32 %v729, %v730
  %v732 = vrot.slane %v708, 4
  %v733 = vmax.f32 %v708, %v732
  %v734 = vrot.slane %v733, 2
  %v735 = vmax.f32 %v733, %v734
  %v736 = vrot.slane %v735, 1
  %v737 = vmax.f32 %v735, %v736
  %v738 = vrot.slane %v709, 4
  %v739 = vmax.f32 %v709, %v738
  %v740 = vrot.slane %v739, 2
  %v741 = vmax.f32 %v739, %v740
  %v742 = vrot.slane %v741, 1
  %v743 = vmax.f32 %v741, %v742
  %v744 = vrot.slane %v710, 4
  %v745 = vmax.f32 %v710, %v744
  %v746 = vrot.slane %v745, 2
  %v747 = vmax.f32 %v745, %v746
  %v748 = vrot.slane %v747, 1
  %v749 = vmax.f32 %v747, %v748
  %v750 = vrot.slane %v711, 4
  %v751 = vmax.f32 %v711, %v750
  %v752 = vrot.slane %v751, 2
  %v753 = vmax.f32 %v751, %v752
  %v754 = vrot.slane %v753, 1
  %v755 = vmax.f32 %v753, %v754
  %v756 = vrot.slane %v712, 4
  %v757 = vmax.f32 %v712, %v756
  %v758 = vrot.slane %v757, 2
  %v759 = vmax.f32 %v757, %v758
  %v760 = vrot.slane %v759, 1
  %v761 = vmax.f32 %v759, %v760
  %vm770 = vcmask 1041409
  %v771 = vsel %vm770, %v725, %v719
  %vm772 = vcmask 1042434
  %v773 = vsel %vm772, %v731, %v771
  %vm774 = vcmask 1043459
  %v775 = vsel %vm774, %v737, %v773
  %vm776 = vcmask 1044484
  %v777 = vsel %vm776, %v743, %v775
  %vm778 = vcmask 1045509
  %v779 = vsel %vm778, %v749, %v777
  %vm780 = vcmask 1046534
  %v781 = vsel %vm780, %v755, %v779
  %vm782 = vcmask 1047559
  %v783 = vsel %vm782, %v761, %v781
  %v785 = vmax.f32 %v713, %v783
  %v786 = vsub.f32 %v713, %v785
  %v787 = vmul.f32 %v786, 1.442695
  %v788 = vpow.pop %v787
  %v790 = vcombine.high %v785, %v785
  %v792 = vunpack.c.l.s4 1966171168
  %v793 = vunpack.c.0.s8 %v792
  %v794 = vlaneseq
  %v795 = vshrl.u32 %v794, 7
  %v796 = vsub.s32 %v793, %v795
  %v797 = vrot.slane %v785, %v796
  %v799 = vunpack.c.l.s4 1966171168
  %v800 = vunpack.c.0.s8 %v799
  %v801 = vlaneseq
  %v802 = vshrl.u32 %v801, 7
  %v803 = vsub.s32 %v800, %v802
  %v804 = vrot.slane %v790, %v803
  %v805 = vcombine.high %v797, %v797
  %v806 = vcombine.high %v804, %v804
  %v808 = vunpack.c.l.s4 1966171168
  %v809 = vunpack.c.0.s8 %v808
  %v810 = vlaneseq
  %v811 = vshrl.u32 %v810, 7
  %v812 = vsub.s32 %v809, %v811
  %v813 = vrot.slane %v797, %v812
  %v815 = vunpack.c.l.s4 1966171168
  %v816 = vunpack.c.0.s8 %v815
  %v817 = vlaneseq
  %v818 = vshrl.u32 %v817, 7
  %v819 = vsub.s32 %v816, %v818
  %v820 = vrot.slane %v804, %v819
  %v822 = vunpack.c.l.s4 1966171168
  %v823 = vunpack.c.0.s8 %v822
  %v824 = vlaneseq
  %v825 = vshrl.u32 %v824, 7
  %v826 = vsub.s32 %v823, %v825
  %v827 = vrot.slane %v805, %v826
  %v829 = vunpack.c.l.s4 1966171168
  %v830 = vunpack.c.0.s8 %v829
  %v831 = vlaneseq
  %v832 = vshrl.u32 %v831, 7
  %v833 = vsub.s32 %v830, %v832
  %v834 = vrot.slane %v806, %v833
  %v835 = vcombine.high %v813, %v813
  %v836 = vcombine.high %v820, %v820
  %v837 = vcombine.high %v827, %v827
  %v838 = vcombine.high %v834, %v834
  %v839 = vlaneseq
  %v840 = vshrl.u32 %v839, 7
  %v841 = vsub.s32 0, %v840
  %v842 = vrot.slane %v813, %v841
  %v843 = vlaneseq
  %v844 = vshrl.u32 %v843, 7
  %v845 = vsub.s32 0, %v844
  %v846 = vrot.slane %v827, %v845
  %v847 = vlaneseq
  %v848 = vshrl.u32 %v847, 7
  %v849 = vsub.s32 0, %v848
  %v850 = vrot.slane %v835, %v849
  %v851 = vlaneseq
  %v852 = vshrl.u32 %v851, 7
  %v853 = vsub.s32 0, %v852
  %v854 = vrot.slane %v837, %v853
  %v855 = vlaneseq
  %v856 = vshrl.u32 %v855, 7
  %v857 = vsub.s32 0, %v856
  %v858 = vrot.slane %v820, %v857
  %v859 = vlaneseq
  %v860 = vshrl.u32 %v859, 7
  %v861 = vsub.s32 0, %v860
  %v862 = vrot.slane %v834, %v861
  %v863 = vlaneseq
  %v864 = vshrl.u32 %v863, 7
  %v865 = vsub.s32 0, %v864
  %v866 = vrot.slane %v836, %v865
  %v867 = vlaneseq
  %v868 = vshrl.u32 %v867, 7
  %v869 = vsub.s32 0, %v868
  %v870 = vrot.slane %v838, %v869
  %v879 = vsub.f32 %v705, %v842
  %v880 = vsub.f32 %v706, %v846
  %v881 = vsub.f32 %v707, %v850
  %v882 = vsub.f32 %v708, %v854
  %v883 = vsub.f32 %v709, %v858
  %v884 = vsub.f32 %v710, %v862
  %v885 = vsub.f32 %v711, %v866
  %v886 = vsub.f32 %v712, %v870
  %v887 = vmul.f32 %v879, 1.442695
  %v888 = vpow.pop %v887
  %v889 = vmul.f32 %v880, 1.442695
  %v890 = vpow.pop %v889
  %v891 = vmul.f32 %v881, 1.442695
  %v892 = vpow.pop %v891
  %v893 = vmul.f32 %v882, 1.442695
  %v894 = vpow.pop %v893
  %v895 = vmul.f32 %v883, 1.442695
  %v896 = vpow.pop %v895
  %v897 = vmul.f32 %v884, 1.442695
  %v898 = vpow.pop %v897
  %v899 = vmul.f32 %v885, 1.442695
  %v900 = vpow.pop %v899
  %v901 = vmul.f32 %v886, 1.442695
  %v902 = vpow.pop %v901
  %v903 = vld [vmem:[#allocation3] sm:$0xff]
  %v904 = vmul.f32 %v788, %v903
  %v905 = vrot.slane %v888, 4
  %v906 = vadd.f32 %v888, %v905
  %v907 = vrot.slane %v906, 2
  %v908 = vadd.f32 %v906, %v907
  %v909 = vrot.slane %v908, 1
  %v910 = vadd.f32 %v908, %v909
  %v911 = vrot.slane %v890, 4
  %v912 = vadd.f32 %v890, %v911
  %v913 = vrot.slane %v912, 2
  %v914 = vadd.f32 %v912, %v913
  %v915 = vrot.slane %v914, 1
  %v916 = vadd.f32 %v914, %v915
  %v917 = vrot.slane %v892, 4
  %v918 = vadd.f32 %v892, %v917
  %v919 = vrot.slane %v918, 2
  %v920 = vadd.f32 %v918, %v919
  %v921 = vrot.slane %v920, 1
  %v922 = vadd.f32 %v920, %v921
  %v923 = vrot.slane %v894, 4
  %v924 = vadd.f32 %v894, %v923
  %v925 = vrot.slane %v924, 2
  %v926 = vadd.f32 %v924, %v925
  %v927 = vrot.slane %v926, 1
  %v928 = vadd.f32 %v926, %v927
  %v929 = vrot.slane %v896, 4
  %v930 = vadd.f32 %v896, %v929
  %v931 = vrot.slane %v930, 2
  %v932 = vadd.f32 %v930, %v931
  %v933 = vrot.slane %v932, 1
  %v934 = vadd.f32 %v932, %v933
  %v935 = vrot.slane %v898, 4
  %v936 = vadd.f32 %v898, %v935
  %v937 = vrot.slane %v936, 2
  %v938 = vadd.f32 %v936, %v937
  %v939 = vrot.slane %v938, 1
  %v940 = vadd.f32 %v938, %v939
  %v941 = vrot.slane %v900, 4
  %v942 = vadd.f32 %v900, %v941
  %v943 = vrot.slane %v942, 2
  %v944 = vadd.f32 %v942, %v943
  %v945 = vrot.slane %v944, 1
  %v946 = vadd.f32 %v944, %v945
  %v947 = vrot.slane %v902, 4
  %v948 = vadd.f32 %v902, %v947
  %v949 = vrot.slane %v948, 2
  %v950 = vadd.f32 %v948, %v949
  %v951 = vrot.slane %v950, 1
  %v952 = vadd.f32 %v950, %v951
  %v961 = vsel %vm770, %v916, %v910
  %v962 = vsel %vm772, %v922, %v961
  %v963 = vsel %vm774, %v928, %v962
  %v964 = vsel %vm776, %v934, %v963
  %v965 = vsel %vm778, %v940, %v964
  %v966 = vsel %vm780, %v946, %v965
  %v967 = vsel %vm782, %v952, %v966
  %v969 = vadd.f32 %v904, %v967
  %970 = vst [vmem:[#allocation3] sm:$0xff] %v969
  %v971 = vld [vmem:[#allocation4] sm:$0xff]
  %v972 = vmul.f32 %v788, %v971
  %v973 = vmul.f32 %v888, %v363
  %v974 = vmul.f32 %v890, %v363
  %v975 = vmul.f32 %v892, %v363
  %v976 = vmul.f32 %v894, %v363
  %v977 = vmul.f32 %v896, %v363
  %v978 = vmul.f32 %v898, %v363
  %v979 = vmul.f32 %v900, %v363
  %v980 = vmul.f32 %v902, %v363
  %v981 = vrot.slane %v973, 4
  %v982 = vadd.f32 %v973, %v981
  %v983 = vrot.slane %v982, 2
  %v984 = vadd.f32 %v982, %v983
  %v985 = vrot.slane %v984, 1
  %v986 = vadd.f32 %v984, %v985
  %v987 = vrot.slane %v974, 4
  %v988 = vadd.f32 %v974, %v987
  %v989 = vrot.slane %v988, 2
  %v990 = vadd.f32 %v988, %v989
  %v991 = vrot.slane %v990, 1
  %v992 = vadd.f32 %v990, %v991
  %v993 = vrot.slane %v975, 4
  %v994 = vadd.f32 %v975, %v993
  %v995 = vrot.slane %v994, 2
  %v996 = vadd.f32 %v994, %v995
  %v997 = vrot.slane %v996, 1
  %v998 = vadd.f32 %v996, %v997
  %v999 = vrot.slane %v976, 4
  %v1000 = vadd.f32 %v976, %v999
  %v1001 = vrot.slane %v1000, 2
  %v1002 = vadd.f32 %v1000, %v1001
  %v1003 = vrot.slane %v1002, 1
  %v1004 = vadd.f32 %v1002, %v1003
  %v1005 = vrot.slane %v977, 4
  %v1006 = vadd.f32 %v977, %v1005
  %v1007 = vrot.slane %v1006, 2
  %v1008 = vadd.f32 %v1006, %v1007
  %v1009 = vrot.slane %v1008, 1
  %v1010 = vadd.f32 %v1008, %v1009
  %v1011 = vrot.slane %v978, 4
  %v1012 = vadd.f32 %v978, %v1011
  %v1013 = vrot.slane %v1012, 2
  %v1014 = vadd.f32 %v1012, %v1013
  %v1015 = vrot.slane %v1014, 1
  %v1016 = vadd.f32 %v1014, %v1015
  %v1017 = vrot.slane %v979, 4
  %v1018 = vadd.f32 %v979, %v1017
  %v1019 = vrot.slane %v1018, 2
  %v1020 = vadd.f32 %v1018, %v1019
  %v1021 = vrot.slane %v1020, 1
  %v1022 = vadd.f32 %v1020, %v1021
  %v1023 = vrot.slane %v980, 4
  %v1024 = vadd.f32 %v980, %v1023
  %v1025 = vrot.slane %v1024, 2
  %v1026 = vadd.f32 %v1024, %v1025
  %v1027 = vrot.slane %v1026, 1
  %v1028 = vadd.f32 %v1026, %v1027
  %v1037 = vsel %vm770, %v992, %v986
  %v1038 = vsel %vm772, %v998, %v1037
  %v1039 = vsel %vm774, %v1004, %v1038
  %v1040 = vsel %vm776, %v1010, %v1039
  %v1041 = vsel %vm778, %v1016, %v1040
  %v1042 = vsel %vm780, %v1022, %v1041
  %v1043 = vsel %vm782, %v1028, %v1042
  %v1045 = vadd.f32 %v972, %v1043
  %1046 = vst [vmem:[#allocation4] sm:$0xff] %v1045
  %1047 = vst [vmem:[#allocation2] sm:$0xff] %v785
  %v1049 = vcombine.high %v216, %v216
  %v1051 = vunpack.c.l.s4 1966171168
  %v1052 = vunpack.c.0.s8 %v1051
  %v1053 = vlaneseq
  %v1054 = vshrl.u32 %v1053, 7
  %v1055 = vsub.s32 %v1052, %v1054
  %v1056 = vrot.slane %v216, %v1055
  %v1058 = vunpack.c.l.s4 1966171168
  %v1059 = vunpack.c.0.s8 %v1058
  %v1060 = vlaneseq
  %v1061 = vshrl.u32 %v1060, 7
  %v1062 = vsub.s32 %v1059, %v1061
  %v1063 = vrot.slane %v1049, %v1062
  %v1064 = vcombine.high %v1056, %v1056
  %v1065 = vcombine.high %v1063, %v1063
  %v1067 = vunpack.c.l.s4 1966171168
  %v1068 = vunpack.c.0.s8 %v1067
  %v1069 = vlaneseq
  %v1070 = vshrl.u32 %v1069, 7
  %v1071 = vsub.s32 %v1068, %v1070
  %v1072 = vrot.slane %v1056, %v1071
  %v1074 = vunpack.c.l.s4 1966171168
  %v1075 = vunpack.c.0.s8 %v1074
  %v1076 = vlaneseq
  %v1077 = vshrl.u32 %v1076, 7
  %v1078 = vsub.s32 %v1075, %v1077
  %v1079 = vrot.slane %v1063, %v1078
  %v1081 = vunpack.c.l.s4 1966171168
  %v1082 = vunpack.c.0.s8 %v1081
  %v1083 = vlaneseq
  %v1084 = vshrl.u32 %v1083, 7
  %v1085 = vsub.s32 %v1082, %v1084
  %v1086 = vrot.slane %v1064, %v1085
  %v1088 = vunpack.c.l.s4 1966171168
  %v1089 = vunpack.c.0.s8 %v1088
  %v1090 = vlaneseq
  %v1091 = vshrl.u32 %v1090, 7
  %v1092 = vsub.s32 %v1089, %v1091
  %v1093 = vrot.slane %v1065, %v1092
  %v1094 = vcombine.high %v1072, %v1072
  %v1095 = vcombine.high %v1079, %v1079
  %v1096 = vcombine.high %v1086, %v1086
  %v1097 = vcombine.high %v1093, %v1093
  %v1098 = vlaneseq
  %v1099 = vshrl.u32 %v1098, 7
  %v1100 = vsub.s32 0, %v1099
  %v1101 = vrot.slane %v1072, %v1100
  %v1102 = vlaneseq
  %v1103 = vshrl.u32 %v1102, 7
  %v1104 = vsub.s32 0, %v1103
  %v1105 = vrot.slane %v1086, %v1104
  %v1106 = vlaneseq
  %v1107 = vshrl.u32 %v1106, 7
  %v1108 = vsub.s32 0, %v1107
  %v1109 = vrot.slane %v1094, %v1108
  %v1110 = vlaneseq
  %v1111 = vshrl.u32 %v1110, 7
  %v1112 = vsub.s32 0, %v1111
  %v1113 = vrot.slane %v1096, %v1112
  %v1114 = vlaneseq
  %v1115 = vshrl.u32 %v1114, 7
  %v1116 = vsub.s32 0, %v1115
  %v1117 = vrot.slane %v1079, %v1116
  %v1118 = vlaneseq
  %v1119 = vshrl.u32 %v1118, 7
  %v1120 = vsub.s32 0, %v1119
  %v1121 = vrot.slane %v1093, %v1120
  %v1122 = vlaneseq
  %v1123 = vshrl.u32 %v1122, 7
  %v1124 = vsub.s32 0, %v1123
  %v1125 = vrot.slane %v1095, %v1124
  %v1126 = vlaneseq
  %v1127 = vshrl.u32 %v1126, 7
  %v1128 = vsub.s32 0, %v1127
  %v1129 = vrot.slane %v1097, %v1128
  %v1138 = vadd.f32 %v1101, %v365
  %v1139 = vadd.f32 %v1105, %v365
  %v1140 = vadd.f32 %v1109, %v365
  %v1141 = vadd.f32 %v1113, %v365
  %v1142 = vadd.f32 %v1117, %v365
  %v1143 = vadd.f32 %v1121, %v365
  %v1144 = vadd.f32 %v1125, %v365
  %v1145 = vadd.f32 %v1129, %v365
  %v1146 = vld [vmem:[%s9] sm:$0xf]
  %v1147 = vld [vmem:[%s9 + $0x4] sm:$0xf]
  %v1148 = vld [vmem:[%s9 + $0x8] sm:$0xf]
  %v1149 = vld [vmem:[%s9 + $0xc] sm:$0xf]
  %v1150 = vld [vmem:[%s9 + $0x10] sm:$0xf]
  %v1151 = vld [vmem:[%s9 + $0x14] sm:$0xf]
  %v1152 = vld [vmem:[%s9 + $0x18] sm:$0xf]
  %v1153 = vld [vmem:[%s9 + $0x1c] sm:$0xf]
  %v1154 = vunpack.c.l.bf16 %v1146
  %v1155 = vunpack.c.l.bf16 %v1147
  %v1156 = vunpack.c.l.bf16 %v1148
  %v1157 = vunpack.c.l.bf16 %v1149
  %v1158 = vunpack.c.l.bf16 %v1150
  %v1159 = vunpack.c.l.bf16 %v1151
  %v1160 = vunpack.c.l.bf16 %v1152
  %v1161 = vunpack.c.l.bf16 %v1153
  %v1162 = vadd.f32 %v1138, %v1154
  %v1163 = vadd.f32 %v1139, %v1155
  %v1164 = vadd.f32 %v1140, %v1156
  %v1165 = vadd.f32 %v1141, %v1157
  %v1166 = vadd.f32 %v1142, %v1158
  %v1167 = vadd.f32 %v1143, %v1159
  %v1168 = vadd.f32 %v1144, %v1160
  %v1169 = vadd.f32 %v1145, %v1161
  %vm1170 = vcmp.gt.f32.partialorder %v1162, 0.0
  %vm1171 = vcmp.gt.f32.partialorder %v1163, 0.0
  %vm1172 = vcmp.gt.f32.partialorder %v1164, 0.0
  %vm1173 = vcmp.gt.f32.partialorder %v1165, 0.0
  %vm1174 = vcmp.gt.f32.partialorder %v1166, 0.0
  %vm1175 = vcmp.gt.f32.partialorder %v1167, 0.0
  %vm1176 = vcmp.gt.f32.partialorder %v1168, 0.0
  %vm1177 = vcmp.gt.f32.partialorder %v1169, 0.0
  %v1178 = vmul.f32 %v1162, 0.2
  %v1179 = vmul.f32 %v1163, 0.2
  %v1180 = vmul.f32 %v1164, 0.2
  %v1181 = vmul.f32 %v1165, 0.2
  %v1182 = vmul.f32 %v1166, 0.2
  %v1183 = vmul.f32 %v1167, 0.2
  %v1184 = vmul.f32 %v1168, 0.2
  %v1185 = vmul.f32 %v1169, 0.2
  %v1186 = vsel %vm1170, %v1162, %v1178
  %v1187 = vsel %vm1171, %v1163, %v1179
  %v1188 = vsel %vm1172, %v1164, %v1180
  %v1189 = vsel %vm1173, %v1165, %v1181
  %v1190 = vsel %vm1174, %v1166, %v1182
  %v1191 = vsel %vm1175, %v1167, %v1183
  %v1192 = vsel %vm1176, %v1168, %v1184
  %v1193 = vsel %vm1177, %v1169, %v1185
  %v1194 = vpack.c.bf16 %v1187, %v1186
  %v1195 = vpack.c.bf16 %v1189, %v1188
  %v1196 = vpack.c.bf16 %v1191, %v1190
  %v1197 = vpack.c.bf16 %v1193, %v1192
  %v1198 = vld [vmem:[%s7] sm:$0xf]
  %v1199 = vld [vmem:[%s7 + $0x4] sm:$0xf]
  %v1200 = vld [vmem:[%s7 + $0x8] sm:$0xf]
  %v1201 = vld [vmem:[%s7 + $0xc] sm:$0xf]
  %v1202 = vld [vmem:[%s7 + $0x10] sm:$0xf]
  %v1203 = vld [vmem:[%s7 + $0x14] sm:$0xf]
  %v1204 = vld [vmem:[%s7 + $0x18] sm:$0xf]
  %v1205 = vld [vmem:[%s7 + $0x1c] sm:$0xf]
  %v1206 = vld [vmem:[%s7 + $0x20] sm:$0xf]
  %v1207 = vld [vmem:[%s7 + $0x24] sm:$0xf]
  %v1208 = vld [vmem:[%s7 + $0x28] sm:$0xf]
  %v1209 = vld [vmem:[%s7 + $0x2c] sm:$0xf]
  %v1210 = vld [vmem:[%s7 + $0x30] sm:$0xf]
  %v1211 = vld [vmem:[%s7 + $0x34] sm:$0xf]
  %v1212 = vld [vmem:[%s7 + $0x38] sm:$0xf]
  %v1213 = vld [vmem:[%s7 + $0x3c] sm:$0xf]
  %v1230 = vunpack.c.l.b16 %v1198
  %v1231 = vunpack.c.l.b16 %v1199
  %v1232 = vunpack.c.l.b16 %v1200
  %v1233 = vunpack.c.l.b16 %v1201
  %v1234 = vunpack.c.l.b16 %v1202
  %v1235 = vunpack.c.l.b16 %v1203
  %v1236 = vunpack.c.l.b16 %v1204
  %v1237 = vunpack.c.l.b16 %v1205
  %v1238 = vunpack.c.l.b16 %v1206
  %v1239 = vunpack.c.l.b16 %v1207
  %v1240 = vunpack.c.l.b16 %v1208
  %v1241 = vunpack.c.l.b16 %v1209
  %v1242 = vunpack.c.l.b16 %v1210
  %v1243 = vunpack.c.l.b16 %v1211
  %v1244 = vunpack.c.l.b16 %v1212
  %v1245 = vunpack.c.l.b16 %v1213
  %v1246 = vpack.c.b16 %v1231, %v1230
  %v1247 = vpack.c.b16 %v1233, %v1232
  %v1248 = vpack.c.b16 %v1235, %v1234
  %v1249 = vpack.c.b16 %v1237, %v1236
  %v1250 = vpack.c.b16 %v1239, %v1238
  %v1251 = vpack.c.b16 %v1241, %v1240
  %v1252 = vpack.c.b16 %v1243, %v1242
  %v1253 = vpack.c.b16 %v1245, %v1244
  %1262 = vmatprep.subr.bf16.mxu0 0
  %1263 = vmatpush1.bf16.msra.mxu0 %v1253
  %1264 = vmatprep.subr.bf16.mxu0 0
  %1265 = vmatpush1.bf16.msra.mxu0 %v1252
  %1266 = vmatprep.subr.bf16.mxu0 0
  %1267 = vmatpush1.bf16.msra.mxu0 %v1251
  %1268 = vmatprep.subr.bf16.mxu0 0
  %1269 = vmatpush1.bf16.msra.mxu0 %v1250
  %1270 = vmatprep.subr.bf16.mxu0 0
  %1271 = vmatpush1.bf16.msra.mxu0 %v1249
  %1272 = vmatprep.subr.bf16.mxu0 0
  %1273 = vmatpush1.bf16.msra.mxu0 %v1248
  %1274 = vmatprep.subr.bf16.mxu0 0
  %1275 = vmatpush1.bf16.msra.mxu0 %v1247
  %1276 = vmatprep.subr.bf16.mxu0 0
  %1277 = vmatpush1.bf16.msra.mxu0 %v1246
  %1278 = vmatprep.subr.bf16.mxu0 0
  %1279 = vmatpush2.bf16.msra.mxu0 0
  %1280 = vmatprep.subr.bf16.mxu0 0
  %1281 = vmatpush2.bf16.msra.mxu0 0
  %1282 = vmatprep.subr.bf16.mxu0 0
  %1283 = vmatpush2.bf16.msra.mxu0 0
  %1284 = vmatprep.subr.bf16.mxu0 0
  %1285 = vmatpush2.bf16.msra.mxu0 0
  %1286 = vmatprep.subr.bf16.mxu0 0
  %1287 = vmatpush2.bf16.msra.mxu0 0
  %1288 = vmatprep.subr.bf16.mxu0 0
  %1289 = vmatpush2.bf16.msra.mxu0 0
  %1290 = vmatprep.subr.bf16.mxu0 0
  %1291 = vmatpush2.bf16.msra.mxu0 0
  %1292 = vmatprep.subr.bf16.mxu0 0
  %1293 = vmatpush2.bf16.msra.mxu0 0
  %1294 = vmatprep.mubr.bf16.mxu0 0
  %1295 = vmatmul.mubr.bf16.gmra.mxu0 %v1194
  %v1296 = vpop.f32.mrf.mxu0
  %v1297 = vadd.f32 0.0, %v1296
  %v1298 = vpop.f32.mrf.mxu0
  %v1299 = vpop.f32.mrf.mxu0
  %v1300 = vadd.f32 0.0, %v1299
  %v1301 = vpop.f32.mrf.mxu0
  %1302 = vmatprep.mubr.bf16.mxu0 0
  %1303 = vmatmul.mubr.bf16.gmra.mxu0 %v1195
  %v1304 = vpop.f32.mrf.mxu0
  %v1305 = vadd.f32 0.0, %v1304
  %v1306 = vpop.f32.mrf.mxu0
  %v1307 = vpop.f32.mrf.mxu0
  %v1308 = vadd.f32 0.0, %v1307
  %v1309 = vpop.f32.mrf.mxu0
  %1310 = vmatprep.mubr.bf16.mxu0 0
  %1311 = vmatmul.mubr.bf16.gmra.mxu0 %v1196
  %v1312 = vpop.f32.mrf.mxu0
  %v1313 = vadd.f32 0.0, %v1312
  %v1314 = vpop.f32.mrf.mxu0
  %v1315 = vpop.f32.mrf.mxu0
  %v1316 = vadd.f32 0.0, %v1315
  %v1317 = vpop.f32.mrf.mxu0
  %1318 = vmatprep.mubr.bf16.mxu0 0
  %1319 = vmatmul.mubr.bf16.gmra.mxu0 %v1197
  %v1320 = vpop.f32.mrf.mxu0
  %v1321 = vadd.f32 0.0, %v1320
  %v1322 = vpop.f32.mrf.mxu0
  %v1323 = vpop.f32.mrf.mxu0
  %v1324 = vadd.f32 0.0, %v1323
  %v1325 = vpop.f32.mrf.mxu0
  %1326 = vdwg.mxu0
  %v1327 = vld [vmem:[%s11] sm:$0xff]
  %v1328 = vlaneseq
  %v1329 = vshrl.u32 %v1328, 7
  %v1330 = vsub.s32 0, %v1329
  %v1331 = vrot.slane %v1327, %v1330
  %1333 = vbcast.lane.b32.xlu0 %v1331, 256
  %v1334 = vpop.permute.xlu0 %1333
  %v1335 = vlaneseq
  %v1336 = vshrl.u32 %v1335, 7
  %v1337 = vsub.s32 1, %v1336
  %v1338 = vrot.slane %v1327, %v1337
  %1340 = vbcast.lane.b32.xlu0 %v1338, 256
  %v1341 = vpop.permute.xlu0 %1340
  %v1342 = vlaneseq
  %v1343 = vshrl.u32 %v1342, 7
  %v1344 = vsub.s32 2, %v1343
  %v1345 = vrot.slane %v1327, %v1344
  %1347 = vbcast.lane.b32.xlu0 %v1345, 256
  %v1348 = vpop.permute.xlu0 %1347
  %v1349 = vlaneseq
  %v1350 = vshrl.u32 %v1349, 7
  %v1351 = vsub.s32 3, %v1350
  %v1352 = vrot.slane %v1327, %v1351
  %1354 = vbcast.lane.b32.xlu0 %v1352, 256
  %v1355 = vpop.permute.xlu0 %1354
  %v1356 = vlaneseq
  %v1357 = vshrl.u32 %v1356, 7
  %v1358 = vsub.s32 4, %v1357
  %v1359 = vrot.slane %v1327, %v1358
  %1361 = vbcast.lane.b32.xlu0 %v1359, 256
  %v1362 = vpop.permute.xlu0 %1361
  %v1363 = vlaneseq
  %v1364 = vshrl.u32 %v1363, 7
  %v1365 = vsub.s32 5, %v1364
  %v1366 = vrot.slane %v1327, %v1365
  %1368 = vbcast.lane.b32.xlu0 %v1366, 256
  %v1369 = vpop.permute.xlu0 %1368
  %v1370 = vlaneseq
  %v1371 = vshrl.u32 %v1370, 7
  %v1372 = vsub.s32 6, %v1371
  %v1373 = vrot.slane %v1327, %v1372
  %1375 = vbcast.lane.b32.xlu0 %v1373, 256
  %v1376 = vpop.permute.xlu0 %1375
  %v1377 = vlaneseq
  %v1378 = vshrl.u32 %v1377, 7
  %v1379 = vsub.s32 7, %v1378
  %v1380 = vrot.slane %v1327, %v1379
  %1382 = vbcast.lane.b32.xlu0 %v1380, 256
  %v1383 = vpop.permute.xlu0 %1382
  %v1384 = vadd.f32 %v1297, %v1334
  %v1385 = vadd.f32 %v1300, %v1341
  %v1386 = vadd.f32 %v1305, %v1348
  %v1387 = vadd.f32 %v1308, %v1355
  %v1388 = vadd.f32 %v1313, %v1362
  %v1389 = vadd.f32 %v1316, %v1369
  %v1390 = vadd.f32 %v1321, %v1376
  %v1391 = vadd.f32 %v1324, %v1383
  %v1392 = vld [vmem:[#allocation5] sm:$0xff]
  %v1393 = vrot.slane %v1384, 4
  %v1394 = vmax.f32 %v1384, %v1393
  %v1395 = vrot.slane %v1394, 2
  %v1396 = vmax.f32 %v1394, %v1395
  %v1397 = vrot.slane %v1396, 1
  %v1398 = vmax.f32 %v1396, %v1397
  %v1399 = vrot.slane %v1385, 4
  %v1400 = vmax.f32 %v1385, %v1399
  %v1401 = vrot.slane %v1400, 2
  %v1402 = vmax.f32 %v1400, %v1401
  %v1403 = vrot.slane %v1402, 1
  %v1404 = vmax.f32 %v1402, %v1403
  %v1405 = vrot.slane %v1386, 4
  %v1406 = vmax.f32 %v1386, %v1405
  %v1407 = vrot.slane %v1406, 2
  %v1408 = vmax.f32 %v1406, %v1407
  %v1409 = vrot.slane %v1408, 1
  %v1410 = vmax.f32 %v1408, %v1409
  %v1411 = vrot.slane %v1387, 4
  %v1412 = vmax.f32 %v1387, %v1411
  %v1413 = vrot.slane %v1412, 2
  %v1414 = vmax.f32 %v1412, %v1413
  %v1415 = vrot.slane %v1414, 1
  %v1416 = vmax.f32 %v1414, %v1415
  %v1417 = vrot.slane %v1388, 4
  %v1418 = vmax.f32 %v1388, %v1417
  %v1419 = vrot.slane %v1418, 2
  %v1420 = vmax.f32 %v1418, %v1419
  %v1421 = vrot.slane %v1420, 1
  %v1422 = vmax.f32 %v1420, %v1421
  %v1423 = vrot.slane %v1389, 4
  %v1424 = vmax.f32 %v1389, %v1423
  %v1425 = vrot.slane %v1424, 2
  %v1426 = vmax.f32 %v1424, %v1425
  %v1427 = vrot.slane %v1426, 1
  %v1428 = vmax.f32 %v1426, %v1427
  %v1429 = vrot.slane %v1390, 4
  %v1430 = vmax.f32 %v1390, %v1429
  %v1431 = vrot.slane %v1430, 2
  %v1432 = vmax.f32 %v1430, %v1431
  %v1433 = vrot.slane %v1432, 1
  %v1434 = vmax.f32 %v1432, %v1433
  %v1435 = vrot.slane %v1391, 4
  %v1436 = vmax.f32 %v1391, %v1435
  %v1437 = vrot.slane %v1436, 2
  %v1438 = vmax.f32 %v1436, %v1437
  %v1439 = vrot.slane %v1438, 1
  %v1440 = vmax.f32 %v1438, %v1439
  %v1449 = vsel %vm770, %v1404, %v1398
  %v1450 = vsel %vm772, %v1410, %v1449
  %v1451 = vsel %vm774, %v1416, %v1450
  %v1452 = vsel %vm776, %v1422, %v1451
  %v1453 = vsel %vm778, %v1428, %v1452
  %v1454 = vsel %vm780, %v1434, %v1453
  %v1455 = vsel %vm782, %v1440, %v1454
  %v1457 = vmax.f32 %v1392, %v1455
  %v1458 = vsub.f32 %v1392, %v1457
  %v1459 = vmul.f32 %v1458, 1.442695
  %v1460 = vpow.pop %v1459
  %v1462 = vcombine.high %v1457, %v1457
  %v1464 = vunpack.c.l.s4 1966171168
  %v1465 = vunpack.c.0.s8 %v1464
  %v1466 = vlaneseq
  %v1467 = vshrl.u32 %v1466, 7
  %v1468 = vsub.s32 %v1465, %v1467
  %v1469 = vrot.slane %v1457, %v1468
  %v1471 = vunpack.c.l.s4 1966171168
  %v1472 = vunpack.c.0.s8 %v1471
  %v1473 = vlaneseq
  %v1474 = vshrl.u32 %v1473, 7
  %v1475 = vsub.s32 %v1472, %v1474
  %v1476 = vrot.slane %v1462, %v1475
  %v1477 = vcombine.high %v1469, %v1469
  %v1478 = vcombine.high %v1476, %v1476
  %v1480 = vunpack.c.l.s4 1966171168
  %v1481 = vunpack.c.0.s8 %v1480
  %v1482 = vlaneseq
  %v1483 = vshrl.u32 %v1482, 7
  %v1484 = vsub.s32 %v1481, %v1483
  %v1485 = vrot.slane %v1469, %v1484
  %v1487 = vunpack.c.l.s4 1966171168
  %v1488 = vunpack.c.0.s8 %v1487
  %v1489 = vlaneseq
  %v1490 = vshrl.u32 %v1489, 7
  %v1491 = vsub.s32 %v1488, %v1490
  %v1492 = vrot.slane %v1476, %v1491
  %v1494 = vunpack.c.l.s4 1966171168
  %v1495 = vunpack.c.0.s8 %v1494
  %v1496 = vlaneseq
  %v1497 = vshrl.u32 %v1496, 7
  %v1498 = vsub.s32 %v1495, %v1497
  %v1499 = vrot.slane %v1477, %v1498
  %v1501 = vunpack.c.l.s4 1966171168
  %v1502 = vunpack.c.0.s8 %v1501
  %v1503 = vlaneseq
  %v1504 = vshrl.u32 %v1503, 7
  %v1505 = vsub.s32 %v1502, %v1504
  %v1506 = vrot.slane %v1478, %v1505
  %v1507 = vcombine.high %v1485, %v1485
  %v1508 = vcombine.high %v1492, %v1492
  %v1509 = vcombine.high %v1499, %v1499
  %v1510 = vcombine.high %v1506, %v1506
  %v1511 = vlaneseq
  %v1512 = vshrl.u32 %v1511, 7
  %v1513 = vsub.s32 0, %v1512
  %v1514 = vrot.slane %v1485, %v1513
  %v1515 = vlaneseq
  %v1516 = vshrl.u32 %v1515, 7
  %v1517 = vsub.s32 0, %v1516
  %v1518 = vrot.slane %v1499, %v1517
  %v1519 = vlaneseq
  %v1520 = vshrl.u32 %v1519, 7
  %v1521 = vsub.s32 0, %v1520
  %v1522 = vrot.slane %v1507, %v1521
  %v1523 = vlaneseq
  %v1524 = vshrl.u32 %v1523, 7
  %v1525 = vsub.s32 0, %v1524
  %v1526 = vrot.slane %v1509, %v1525
  %v1527 = vlaneseq
  %v1528 = vshrl.u32 %v1527, 7
  %v1529 = vsub.s32 0, %v1528
  %v1530 = vrot.slane %v1492, %v1529
  %v1531 = vlaneseq
  %v1532 = vshrl.u32 %v1531, 7
  %v1533 = vsub.s32 0, %v1532
  %v1534 = vrot.slane %v1506, %v1533
  %v1535 = vlaneseq
  %v1536 = vshrl.u32 %v1535, 7
  %v1537 = vsub.s32 0, %v1536
  %v1538 = vrot.slane %v1508, %v1537
  %v1539 = vlaneseq
  %v1540 = vshrl.u32 %v1539, 7
  %v1541 = vsub.s32 0, %v1540
  %v1542 = vrot.slane %v1510, %v1541
  %v1551 = vsub.f32 %v1384, %v1514
  %v1552 = vsub.f32 %v1385, %v1518
  %v1553 = vsub.f32 %v1386, %v1522
  %v1554 = vsub.f32 %v1387, %v1526
  %v1555 = vsub.f32 %v1388, %v1530
  %v1556 = vsub.f32 %v1389, %v1534
  %v1557 = vsub.f32 %v1390, %v1538
  %v1558 = vsub.f32 %v1391, %v1542
  %v1559 = vmul.f32 %v1551, 1.442695
  %v1560 = vpow.pop %v1559
  %v1561 = vmul.f32 %v1552, 1.442695
  %v1562 = vpow.pop %v1561
  %v1563 = vmul.f32 %v1553, 1.442695
  %v1564 = vpow.pop %v1563
  %v1565 = vmul.f32 %v1554, 1.442695
  %v1566 = vpow.pop %v1565
  %v1567 = vmul.f32 %v1555, 1.442695
  %v1568 = vpow.pop %v1567
  %v1569 = vmul.f32 %v1556, 1.442695
  %v1570 = vpow.pop %v1569
  %v1571 = vmul.f32 %v1557, 1.442695
  %v1572 = vpow.pop %v1571
  %v1573 = vmul.f32 %v1558, 1.442695
  %v1574 = vpow.pop %v1573
  %v1575 = vld [vmem:[#allocation6] sm:$0xff]
  %v1576 = vmul.f32 %v1460, %v1575
  %v1577 = vrot.slane %v1560, 4
  %v1578 = vadd.f32 %v1560, %v1577
  %v1579 = vrot.slane %v1578, 2
  %v1580 = vadd.f32 %v1578, %v1579
  %v1581 = vrot.slane %v1580, 1
  %v1582 = vadd.f32 %v1580, %v1581
  %v1583 = vrot.slane %v1562, 4
  %v1584 = vadd.f32 %v1562, %v1583
  %v1585 = vrot.slane %v1584, 2
  %v1586 = vadd.f32 %v1584, %v1585
  %v1587 = vrot.slane %v1586, 1
  %v1588 = vadd.f32 %v1586, %v1587
  %v1589 = vrot.slane %v1564, 4
  %v1590 = vadd.f32 %v1564, %v1589
  %v1591 = vrot.slane %v1590, 2
  %v1592 = vadd.f32 %v1590, %v1591
  %v1593 = vrot.slane %v1592, 1
  %v1594 = vadd.f32 %v1592, %v1593
  %v1595 = vrot.slane %v1566, 4
  %v1596 = vadd.f32 %v1566, %v1595
  %v1597 = vrot.slane %v1596, 2
  %v1598 = vadd.f32 %v1596, %v1597
  %v1599 = vrot.slane %v1598, 1
  %v1600 = vadd.f32 %v1598, %v1599
  %v1601 = vrot.slane %v1568, 4
  %v1602 = vadd.f32 %v1568, %v1601
  %v1603 = vrot.slane %v1602, 2
  %v1604 = vadd.f32 %v1602, %v1603
  %v1605 = vrot.slane %v1604, 1
  %v1606 = vadd.f32 %v1604, %v1605
  %v1607 = vrot.slane %v1570, 4
  %v1608 = vadd.f32 %v1570, %v1607
  %v1609 = vrot.slane %v1608, 2
  %v1610 = vadd.f32 %v1608, %v1609
  %v1611 = vrot.slane %v1610, 1
  %v1612 = vadd.f32 %v1610, %v1611
  %v1613 = vrot.slane %v1572, 4
  %v1614 = vadd.f32 %v1572, %v1613
  %v1615 = vrot.slane %v1614, 2
  %v1616 = vadd.f32 %v1614, %v1615
  %v1617 = vrot.slane %v1616, 1
  %v1618 = vadd.f32 %v1616, %v1617
  %v1619 = vrot.slane %v1574, 4
  %v1620 = vadd.f32 %v1574, %v1619
  %v1621 = vrot.slane %v1620, 2
  %v1622 = vadd.f32 %v1620, %v1621
  %v1623 = vrot.slane %v1622, 1
  %v1624 = vadd.f32 %v1622, %v1623
  %v1633 = vsel %vm770, %v1588, %v1582
  %v1634 = vsel %vm772, %v1594, %v1633
  %v1635 = vsel %vm774, %v1600, %v1634
  %v1636 = vsel %vm776, %v1606, %v1635
  %v1637 = vsel %vm778, %v1612, %v1636
  %v1638 = vsel %vm780, %v1618, %v1637
  %v1639 = vsel %vm782, %v1624, %v1638
  %v1641 = vadd.f32 %v1576, %v1639
  %1642 = vst [vmem:[#allocation6] sm:$0xff] %v1641
  %v1643 = vld [vmem:[#allocation7] sm:$0xff]
  %v1644 = vmul.f32 %v1460, %v1643
  %v1645 = vmul.f32 %v1560, %v365
  %v1646 = vmul.f32 %v1562, %v365
  %v1647 = vmul.f32 %v1564, %v365
  %v1648 = vmul.f32 %v1566, %v365
  %v1649 = vmul.f32 %v1568, %v365
  %v1650 = vmul.f32 %v1570, %v365
  %v1651 = vmul.f32 %v1572, %v365
  %v1652 = vmul.f32 %v1574, %v365
  %v1653 = vrot.slane %v1645, 4
  %v1654 = vadd.f32 %v1645, %v1653
  %v1655 = vrot.slane %v1654, 2
  %v1656 = vadd.f32 %v1654, %v1655
  %v1657 = vrot.slane %v1656, 1
  %v1658 = vadd.f32 %v1656, %v1657
  %v1659 = vrot.slane %v1646, 4
  %v1660 = vadd.f32 %v1646, %v1659
  %v1661 = vrot.slane %v1660, 2
  %v1662 = vadd.f32 %v1660, %v1661
  %v1663 = vrot.slane %v1662, 1
  %v1664 = vadd.f32 %v1662, %v1663
  %v1665 = vrot.slane %v1647, 4
  %v1666 = vadd.f32 %v1647, %v1665
  %v1667 = vrot.slane %v1666, 2
  %v1668 = vadd.f32 %v1666, %v1667
  %v1669 = vrot.slane %v1668, 1
  %v1670 = vadd.f32 %v1668, %v1669
  %v1671 = vrot.slane %v1648, 4
  %v1672 = vadd.f32 %v1648, %v1671
  %v1673 = vrot.slane %v1672, 2
  %v1674 = vadd.f32 %v1672, %v1673
  %v1675 = vrot.slane %v1674, 1
  %v1676 = vadd.f32 %v1674, %v1675
  %v1677 = vrot.slane %v1649, 4
  %v1678 = vadd.f32 %v1649, %v1677
  %v1679 = vrot.slane %v1678, 2
  %v1680 = vadd.f32 %v1678, %v1679
  %v1681 = vrot.slane %v1680, 1
  %v1682 = vadd.f32 %v1680, %v1681
  %v1683 = vrot.slane %v1650, 4
  %v1684 = vadd.f32 %v1650, %v1683
  %v1685 = vrot.slane %v1684, 2
  %v1686 = vadd.f32 %v1684, %v1685
  %v1687 = vrot.slane %v1686, 1
  %v1688 = vadd.f32 %v1686, %v1687
  %v1689 = vrot.slane %v1651, 4
  %v1690 = vadd.f32 %v1651, %v1689
  %v1691 = vrot.slane %v1690, 2
  %v1692 = vadd.f32 %v1690, %v1691
  %v1693 = vrot.slane %v1692, 1
  %v1694 = vadd.f32 %v1692, %v1693
  %v1695 = vrot.slane %v1652, 4
  %v1696 = vadd.f32 %v1652, %v1695
  %v1697 = vrot.slane %v1696, 2
  %v1698 = vadd.f32 %v1696, %v1697
  %v1699 = vrot.slane %v1698, 1
  %v1700 = vadd.f32 %v1698, %v1699
  %v1709 = vsel %vm770, %v1664, %v1658
  %v1710 = vsel %vm772, %v1670, %v1709
  %v1711 = vsel %vm774, %v1676, %v1710
  %v1712 = vsel %vm776, %v1682, %v1711
  %v1713 = vsel %vm778, %v1688, %v1712
  %v1714 = vsel %vm780, %v1694, %v1713
  %v1715 = vsel %vm782, %v1700, %v1714
  %v1717 = vadd.f32 %v1644, %v1715
  %1718 = vst [vmem:[#allocation7] sm:$0xff] %v1717
  %1719 = vst [vmem:[#allocation5] sm:$0xff] %v1457
  // Predicated region
  $region74: #{_lambda_.6} parent=0 // pred_check
    %p1720 = pneg %p57
  $region75: #{_lambda_.6} parent=0 // pred_check_branch
    %1722 = sbr.rel (%p1720) target = $region77
  $region76: #{_lambda_.6} parent=0 // pred_region
    %v1723 = vld [vmem:[#allocation4] sm:$0xff]
    %v1724 = vld [vmem:[#allocation3] sm:$0xff]
    %v1725 = vrcp.pop %v1724
    %v1726 = vmul.f32 %v1723, %v1725
    %v1727 = vld [vmem:[#allocation7] sm:$0xff]
    %v1728 = vld [vmem:[#allocation6] sm:$0xff]
    %v1729 = vrcp.pop %v1728
    %v1730 = vmul.f32 %v1727, %v1729
    %v1731 = vpack.c.bf16 %v1726, %v1726
    %v1732 = vld [vmem:[%s12] sm:$0xf]
    %v1733 = vld [vmem:[%s12 + $0x4] sm:$0xf]
    %v1734 = vld [vmem:[%s12 + $0x8] sm:$0xf]
    %v1735 = vld [vmem:[%s12 + $0xc] sm:$0xf]
    %v1736 = vld [vmem:[%s12 + $0x10] sm:$0xf]
    %v1737 = vld [vmem:[%s12 + $0x14] sm:$0xf]
    %v1738 = vld [vmem:[%s12 + $0x18] sm:$0xf]
    %v1739 = vld [vmem:[%s12 + $0x1c] sm:$0xf]
    %v1740 = vld [vmem:[%s12 + $0x20] sm:$0xf]
    %v1741 = vld [vmem:[%s12 + $0x24] sm:$0xf]
    %v1742 = vld [vmem:[%s12 + $0x28] sm:$0xf]
    %v1743 = vld [vmem:[%s12 + $0x2c] sm:$0xf]
    %v1744 = vld [vmem:[%s12 + $0x30] sm:$0xf]
    %v1745 = vld [vmem:[%s12 + $0x34] sm:$0xf]
    %v1746 = vld [vmem:[%s12 + $0x38] sm:$0xf]
    %v1747 = vld [vmem:[%s12 + $0x3c] sm:$0xf]
    %v1748 = vpack.c.bf16 %v1730, %v1730
    %v1749 = vld [vmem:[%s13] sm:$0xf]
    %v1750 = vld [vmem:[%s13 + $0x4] sm:$0xf]
    %v1751 = vld [vmem:[%s13 + $0x8] sm:$0xf]
    %v1752 = vld [vmem:[%s13 + $0xc] sm:$0xf]
    %v1753 = vld [vmem:[%s13 + $0x10] sm:$0xf]
    %v1754 = vld [vmem:[%s13 + $0x14] sm:$0xf]
    %v1755 = vld [vmem:[%s13 + $0x18] sm:$0xf]
    %v1756 = vld [vmem:[%s13 + $0x1c] sm:$0xf]
    %v1757 = vld [vmem:[%s13 + $0x20] sm:$0xf]
    %v1758 = vld [vmem:[%s13 + $0x24] sm:$0xf]
    %v1759 = vld [vmem:[%s13 + $0x28] sm:$0xf]
    %v1760 = vld [vmem:[%s13 + $0x2c] sm:$0xf]
    %v1761 = vld [vmem:[%s13 + $0x30] sm:$0xf]
    %v1762 = vld [vmem:[%s13 + $0x34] sm:$0xf]
    %v1763 = vld [vmem:[%s13 + $0x38] sm:$0xf]
    %v1764 = vld [vmem:[%s13 + $0x3c] sm:$0xf]
    %v1781 = vunpack.c.l.b16 %v1749
    %v1782 = vunpack.c.l.b16 %v1750
    %v1783 = vunpack.c.l.b16 %v1751
    %v1784 = vunpack.c.l.b16 %v1752
    %v1785 = vunpack.c.l.b16 %v1753
    %v1786 = vunpack.c.l.b16 %v1754
    %v1787 = vunpack.c.l.b16 %v1755
    %v1788 = vunpack.c.l.b16 %v1756
    %v1789 = vunpack.c.l.b16 %v1757
    %v1790 = vunpack.c.l.b16 %v1758
    %v1791 = vunpack.c.l.b16 %v1759
    %v1792 = vunpack.c.l.b16 %v1760
    %v1793 = vunpack.c.l.b16 %v1761
    %v1794 = vunpack.c.l.b16 %v1762
    %v1795 = vunpack.c.l.b16 %v1763
    %v1796 = vunpack.c.l.b16 %v1764
    %v1797 = vpack.c.b16 %v1782, %v1781
    %v1798 = vpack.c.b16 %v1784, %v1783
    %v1799 = vpack.c.b16 %v1786, %v1785
    %v1800 = vpack.c.b16 %v1788, %v1787
    %v1801 = vpack.c.b16 %v1790, %v1789
    %v1802 = vpack.c.b16 %v1792, %v1791
    %v1803 = vpack.c.b16 %v1794, %v1793
    %v1804 = vpack.c.b16 %v1796, %v1795
    %1813 = vmatprep.subr.bf16.mxu0 0
    %1814 = vmatpush1.bf16.msra.mxu0 %v1804
    %1815 = vmatprep.subr.bf16.mxu0 0
    %1816 = vmatpush1.bf16.msra.mxu0 %v1803
    %1817 = vmatprep.subr.bf16.mxu0 0
    %1818 = vmatpush1.bf16.msra.mxu0 %v1802
    %1819 = vmatprep.subr.bf16.mxu0 0
    %1820 = vmatpush1.bf16.msra.mxu0 %v1801
    %1821 = vmatprep.subr.bf16.mxu0 0
    %1822 = vmatpush1.bf16.msra.mxu0 %v1800
    %1823 = vmatprep.subr.bf16.mxu0 0
    %1824 = vmatpush1.bf16.msra.mxu0 %v1799
    %1825 = vmatprep.subr.bf16.mxu0 0
    %1826 = vmatpush1.bf16.msra.mxu0 %v1798
    %1827 = vmatprep.subr.bf16.mxu0 0
    %1828 = vmatpush1.bf16.msra.mxu0 %v1797
    %1829 = vmatprep.subr.bf16.mxu0 0
    %1830 = vmatpush2.bf16.msra.mxu0 0
    %1831 = vmatprep.subr.bf16.mxu0 0
    %1832 = vmatpush2.bf16.msra.mxu0 0
    %1833 = vmatprep.subr.bf16.mxu0 0
    %1834 = vmatpush2.bf16.msra.mxu0 0
    %1835 = vmatprep.subr.bf16.mxu0 0
    %1836 = vmatpush2.bf16.msra.mxu0 0
    %1837 = vmatprep.subr.bf16.mxu0 0
    %1838 = vmatpush2.bf16.msra.mxu0 0
    %1839 = vmatprep.subr.bf16.mxu0 0
    %1840 = vmatpush2.bf16.msra.mxu0 0
    %1841 = vmatprep.subr.bf16.mxu0 0
    %1842 = vmatpush2.bf16.msra.mxu0 0
    %1843 = vmatprep.subr.bf16.mxu0 0
    %1844 = vmatpush2.bf16.msra.mxu0 0
    %1845 = vmatprep.mubr.bf16.mxu0 0
    %1846 = vmatmul.mubr.bf16.gmra.mxu0 %v1748
    %v1847 = vpop.f32.mrf.mxu0
    %v1848 = vadd.f32 0.0, %v1847
    %v1849 = vpop.f32.mrf.mxu0
    %v1850 = vpop.f32.mrf.mxu0
    %v1851 = vpop.f32.mrf.mxu0
    %1852 = vdwg.mxu0
    %v1869 = vunpack.c.l.b16 %v1732
    %v1870 = vunpack.c.l.b16 %v1733
    %v1871 = vunpack.c.l.b16 %v1734
    %v1872 = vunpack.c.l.b16 %v1735
    %v1873 = vunpack.c.l.b16 %v1736
    %v1874 = vunpack.c.l.b16 %v1737
    %v1875 = vunpack.c.l.b16 %v1738
    %v1876 = vunpack.c.l.b16 %v1739
    %v1877 = vunpack.c.l.b16 %v1740
    %v1878 = vunpack.c.l.b16 %v1741
    %v1879 = vunpack.c.l.b16 %v1742
    %v1880 = vunpack.c.l.b16 %v1743
    %v1881 = vunpack.c.l.b16 %v1744
    %v1882 = vunpack.c.l.b16 %v1745
    %v1883 = vunpack.c.l.b16 %v1746
    %v1884 = vunpack.c.l.b16 %v1747
    %v1885 = vpack.c.b16 %v1870, %v1869
    %v1886 = vpack.c.b16 %v1872, %v1871
    %v1887 = vpack.c.b16 %v1874, %v1873
    %v1888 = vpack.c.b16 %v1876, %v1875
    %v1889 = vpack.c.b16 %v1878, %v1877
    %v1890 = vpack.c.b16 %v1880, %v1879
    %v1891 = vpack.c.b16 %v1882, %v1881
    %v1892 = vpack.c.b16 %v1884, %v1883
    %1901 = vmatprep.subr.bf16.mxu0 0
    %1902 = vmatpush1.bf16.msra.mxu0 %v1892
    %1903 = vmatprep.subr.bf16.mxu0 0
    %1904 = vmatpush1.bf16.msra.mxu0 %v1891
    %1905 = vmatprep.subr.bf16.mxu0 0
    %1906 = vmatpush1.bf16.msra.mxu0 %v1890
    %1907 = vmatprep.subr.bf16.mxu0 0
    %1908 = vmatpush1.bf16.msra.mxu0 %v1889
    %1909 = vmatprep.subr.bf16.mxu0 0
    %1910 = vmatpush1.bf16.msra.mxu0 %v1888
    %1911 = vmatprep.subr.bf16.mxu0 0
    %1912 = vmatpush1.bf16.msra.mxu0 %v1887
    %1913 = vmatprep.subr.bf16.mxu0 0
    %1914 = vmatpush1.bf16.msra.mxu0 %v1886
    %1915 = vmatprep.subr.bf16.mxu0 0
    %1916 = vmatpush1.bf16.msra.mxu0 %v1885
    %1917 = vmatprep.subr.bf16.mxu0 0
    %1918 = vmatpush2.bf16.msra.mxu0 0
    %1919 = vmatprep.subr.bf16.mxu0 0
    %1920 = vmatpush2.bf16.msra.mxu0 0
    %1921 = vmatprep.subr.bf16.mxu0 0
    %1922 = vmatpush2.bf16.msra.mxu0 0
    %1923 = vmatprep.subr.bf16.mxu0 0
    %1924 = vmatpush2.bf16.msra.mxu0 0
    %1925 = vmatprep.subr.bf16.mxu0 0
    %1926 = vmatpush2.bf16.msra.mxu0 0
    %1927 = vmatprep.subr.bf16.mxu0 0
    %1928 = vmatpush2.bf16.msra.mxu0 0
    %1929 = vmatprep.subr.bf16.mxu0 0
    %1930 = vmatpush2.bf16.msra.mxu0 0
    %1931 = vmatprep.subr.bf16.mxu0 0
    %1932 = vmatpush2.bf16.msra.mxu0 0
    %1933 = vmatprep.mubr.bf16.mxu0 0
    %1934 = vmatmul.mubr.bf16.gmra.mxu0 %v1731
    %v1935 = vpop.f32.mrf.mxu0
    %v1936 = vadd.f32 %v1848, %v1935
    %v1937 = vpop.f32.mrf.mxu0
    %v1938 = vpop.f32.mrf.mxu0
    %v1939 = vpop.f32.mrf.mxu0
    %1940 = vdwg.mxu0
    %v1941 = vld [vmem:[%s14] sm:$0x1]
    %v1943 = vlaneseq
    %v1944 = vshrl.u32 %v1943, 7
    %v1945 = vsub.s32 0, %v1944
    %v1946 = vrot.slane %v1941, %v1945
    %v1948 = vadd.f32 %v1936, %v1946
    %v1949 = vmax.f32 %v1948, 0.0
    %v1950 = vpack.c.bf16 %v1949, %v1949
    %v1951 = vld [vmem:[%s15] sm:$0xf]
    %v1952 = vld [vmem:[%s15 + $0x4] sm:$0xf]
    %v1953 = vld [vmem:[%s15 + $0x8] sm:$0xf]
    %v1954 = vld [vmem:[%s15 + $0xc] sm:$0xf]
    %v1955 = vld [vmem:[%s15 + $0x10] sm:$0xf]
    %v1956 = vld [vmem:[%s15 + $0x14] sm:$0xf]
    %v1957 = vld [vmem:[%s15 + $0x18] sm:$0xf]
    %v1958 = vld [vmem:[%s15 + $0x1c] sm:$0xf]
    %v1959 = vld [vmem:[%s15 + $0x20] sm:$0xf]
    %v1960 = vld [vmem:[%s15 + $0x24] sm:$0xf]
    %v1961 = vld [vmem:[%s15 + $0x28] sm:$0xf]
    %v1962 = vld [vmem:[%s15 + $0x2c] sm:$0xf]
    %v1963 = vld [vmem:[%s15 + $0x30] sm:$0xf]
    %v1964 = vld [vmem:[%s15 + $0x34] sm:$0xf]
    %v1965 = vld [vmem:[%s15 + $0x38] sm:$0xf]
    %v1966 = vld [vmem:[%s15 + $0x3c] sm:$0xf]
    %v1967 = vld [vmem:[%s16] sm:$0x1]
    %v1969 = vlaneseq
    %v1970 = vshrl.u32 %v1969, 7
    %v1971 = vsub.s32 0, %v1970
    %v1972 = vrot.slane %v1967, %v1971
    %v1990 = vunpack.c.l.b16 %v1951
    %v1991 = vunpack.c.l.b16 %v1952
    %v1992 = vunpack.c.l.b16 %v1953
    %v1993 = vunpack.c.l.b16 %v1954
    %v1994 = vunpack.c.l.b16 %v1955
    %v1995 = vunpack.c.l.b16 %v1956
    %v1996 = vunpack.c.l.b16 %v1957
    %v1997 = vunpack.c.l.b16 %v1958
    %v1998 = vunpack.c.l.b16 %v1959
    %v1999 = vunpack.c.l.b16 %v1960
    %v2000 = vunpack.c.l.b16 %v1961
    %v2001 = vunpack.c.l.b16 %v1962
    %v2002 = vunpack.c.l.b16 %v1963
    %v2003 = vunpack.c.l.b16 %v1964
    %v2004 = vunpack.c.l.b16 %v1965
    %v2005 = vunpack.c.l.b16 %v1966
    %v2006 = vpack.c.b16 %v1991, %v1990
    %v2007 = vpack.c.b16 %v1993, %v1992
    %v2008 = vpack.c.b16 %v1995, %v1994
    %v2009 = vpack.c.b16 %v1997, %v1996
    %v2010 = vpack.c.b16 %v1999, %v1998
    %v2011 = vpack.c.b16 %v2001, %v2000
    %v2012 = vpack.c.b16 %v2003, %v2002
    %v2013 = vpack.c.b16 %v2005, %v2004
    %2022 = vmatprep.subr.bf16.mxu0 0
    %2023 = vmatpush1.bf16.msra.mxu0 %v2013
    %2024 = vmatprep.subr.bf16.mxu0 0
    %2025 = vmatpush1.bf16.msra.mxu0 %v2012
    %2026 = vmatprep.subr.bf16.mxu0 0
    %2027 = vmatpush1.bf16.msra.mxu0 %v2011
    %2028 = vmatprep.subr.bf16.mxu0 0
    %2029 = vmatpush1.bf16.msra.mxu0 %v2010
    %2030 = vmatprep.subr.bf16.mxu0 0
    %2031 = vmatpush1.bf16.msra.mxu0 %v2009
    %2032 = vmatprep.subr.bf16.mxu0 0
    %2033 = vmatpush1.bf16.msra.mxu0 %v2008
    %2034 = vmatprep.subr.bf16.mxu0 0
    %2035 = vmatpush1.bf16.msra.mxu0 %v2007
    %2036 = vmatprep.subr.bf16.mxu0 0
    %2037 = vmatpush1.bf16.msra.mxu0 %v2006
    %2038 = vmatprep.subr.bf16.mxu0 0
    %2039 = vmatpush2.bf16.msra.mxu0 0
    %2040 = vmatprep.subr.bf16.mxu0 0
    %2041 = vmatpush2.bf16.msra.mxu0 0
    %2042 = vmatprep.subr.bf16.mxu0 0
    %2043 = vmatpush2.bf16.msra.mxu0 0
    %2044 = vmatprep.subr.bf16.mxu0 0
    %2045 = vmatpush2.bf16.msra.mxu0 0
    %2046 = vmatprep.subr.bf16.mxu0 0
    %2047 = vmatpush2.bf16.msra.mxu0 0
    %2048 = vmatprep.subr.bf16.mxu0 0
    %2049 = vmatpush2.bf16.msra.mxu0 0
    %2050 = vmatprep.subr.bf16.mxu0 0
    %2051 = vmatpush2.bf16.msra.mxu0 0
    %2052 = vmatprep.subr.bf16.mxu0 0
    %2053 = vmatpush2.bf16.msra.mxu0 0
    %2054 = vmatprep.mubr.bf16.mxu0 0
    %2055 = vmatmul.mubr.bf16.gmra.mxu0 %v1950
    %v2056 = vpop.f32.mrf.mxu0
    %v2057 = vadd.f32 %v1972, %v2056
    %v2058 = vpop.f32.mrf.mxu0
    %v2059 = vpop.f32.mrf.mxu0
    %v2060 = vpop.f32.mrf.mxu0
    %2061 = vdwg.mxu0
    %2062 = vst [vmem:[%s17] sm:$0xff] %v2057
  $region77: #{_lambda_.6} parent=0 // pred_fallthru
    _
  // Predicated region
  $region78: #{_lambda_.6} parent=0 // pred_check
    _
  $region79: #{_lambda_.6} parent=0 // pred_check_branch
    %2064 = sbr.rel (0) target = $region81
  $region80: #{_lambda_.6} parent=0 // pred_region
    _
  $region81: #{_lambda_.6} parent=0 // pred_fallthru
    _
  // Predicated region
  $region82: #{_lambda_.6} parent=0 // pred_check
    _
  $region83: #{_lambda_.6} parent=0 // pred_check_branch
    %2066 = sbr.rel (0) target = $region85
  $region84: #{_lambda_.6} parent=0 // pred_region
    _
  $region85: #{_lambda_.6} parent=0 // pred_fallthru
    _

</llo_original>
